<compile_context>
chip_gen: v5e
topology: v5e:2x2
jax: 0.10.0
libtpu: 0.0.40
codegen_flags: <defaults>
</compile_context>

<pallas_src>
import jax
import jax.numpy as jnp
from jax.experimental import pallas as pl
from jax.experimental.pallas import tpu as pltpu  # noqa: F401  (imported for TPU backend use)

# ---- small synthetic config (module default hidden_size=768 scaled down) ----
B, S, H = 2, 8, 32          # batch, seq (<= max_text_length=128), hidden
NUM_HEADS = 4
D_HEAD = H // NUM_HEADS
INTER = 4 * H
VOCAB = 128                  # MXU-aligned synthetic vocab
NUM_LAYERS = 2
NUM_CLASS = 4                # self.fc exists in __init__ but is unused in forward()
LN_EPS = 1e-12

# packed-table row offsets (word | pos | type | emb_ln_g | emb_ln_b | pooler_b)
ROW_WORD = 0
ROW_POS = VOCAB
ROW_TYPE = VOCAB + S
ROW_EMB_G = VOCAB + S + 2
ROW_EMB_B = VOCAB + S + 3
ROW_POOL_B = VOCAB + S + 4
N_TABLE_ROWS = VOCAB + S + 5


# ----------------------------- kernel helpers --------------------------------
def _layernorm(x, g, b):
    mu = jnp.mean(x, axis=-1, keepdims=True)
    var = jnp.mean((x - mu) ** 2, axis=-1, keepdims=True)
    return (x - mu) * jax.lax.rsqrt(var + LN_EPS) * g + b


def _split_heads(qkv, base):
    # width-D_HEAD column blocks at `base` -> [B*NUM_HEADS, S, D_HEAD]  (batch = h*B + b)
    # Only lane slices + tile-aligned leading-dim reshapes + a leading-dim concat.
    pieces = [
        qkv[:, base + h * D_HEAD: base + (h + 1) * D_HEAD].reshape(B, S, D_HEAD)
        for h in range(NUM_HEADS)
    ]
    return jnp.concatenate(pieces, axis=0)


def _merge_heads(ctx):
    # [B*NUM_HEADS, S, D_HEAD] -> [B*S, H]
    cols = [ctx[h * B:(h + 1) * B].reshape(B * S, D_HEAD) for h in range(NUM_HEADS)]
    return jnp.concatenate(cols, axis=-1)


# --------------------------- fused encoder kernel ------------------------------
def encoder_kernel(ids_ref, tab_ref, wqkv_ref, bqkv_ref, wo_ref,
                   w1_ref, b1_ref, w2_ref, vecs_ref, wp_ref, o_ref):
    # ---- embedding: one-hot MXU gather + position/type embeddings + LayerNorm ----
    word_tab = tab_ref[ROW_WORD:ROW_WORD + VOCAB, :]            # [VOCAB, H]
    pos_tab = tab_ref[ROW_POS:ROW_POS + S, :]                   # [S, H]
    type0 = tab_ref[ROW_TYPE:ROW_TYPE + 1, :]                   # [1, H]
    emb_g = tab_ref[ROW_EMB_G:ROW_EMB_G + 1, :]
    emb_b = tab_ref[ROW_EMB_B:ROW_EMB_B + 1, :]
    pool_b = tab_ref[ROW_POOL_B:ROW_POOL_B + 1, :]

    ids = ids_ref[...]                                           # [B*S, 1] int32
    onehot = (ids == jax.lax.broadcasted_iota(jnp.int32, (B * S, VOCAB), 1)
              ).astype(jnp.float32)
    x = jnp.dot(onehot, word_tab, preferred_element_type=jnp.float32)     # token gather
    x = x + jnp.concatenate([pos_tab] * B, axis=0) + type0                # [B*S, H]
    x = _layernorm(x, emb_g, emb_b)

    for l in range(NUM_LAYERS):                                  # static unroll
        vec = vecs_ref[l]                                        # [6, H]
        bo, b2 = vec[0:1, :], vec[1:2, :]
        ln1_g, ln1_b = vec[2:3, :], vec[3:4, :]
        ln2_g, ln2_b = vec[4:5, :], vec[5:6, :]

        # ---- self-attention: fused QKV projection (bf16 operands, f32 accumulate) ----
        # (1/sqrt(D_HEAD) is folded into the Q block of wqkv/bqkv at init time)
        qkv = (jnp.dot(x.astype(jnp.bfloat16), wqkv_ref[l],
                       preferred_element_type=jnp.float32) + bqkv_ref[l])   # [B*S, 3H]
        q = _split_heads(qkv, 0 * H)                             # [B*NH, S, dH]
        k = _split_heads(qkv, 1 * H)
        v = _split_heads(qkv, 2 * H)

        # head-batched attention: two batched contractions per layer
        s = jnp.einsum('bqd,bkd->bqk', q, k, preferred_element_type=jnp.float32)
        s = s - jnp.max(s, axis=-1, keepdims=True)
        p = jnp.exp(s)
        p = p * pl.reciprocal(jnp.sum(p, axis=-1, keepdims=True), approx=True)
        ctx = jnp.einsum('bqk,bkd->bqd', p, v, preferred_element_type=jnp.float32)
        ctx = _merge_heads(ctx)                                  # [B*S, H]

        attn = (jnp.dot(ctx.astype(jnp.bfloat16), wo_ref[l],
                        preferred_element_type=jnp.float32) + bo)
        x = _layernorm(x + attn, ln1_g, ln1_b)

        # ---- feed-forward ----
        h1 = (jnp.dot(x.astype(jnp.bfloat16), w1_ref[l],
                      preferred_element_type=jnp.float32) + b1_ref[l])
        # TODO(synk): HF BERT uses exact erf-GELU; tanh approximation kept (EUP-friendly).
        h1 = jax.nn.gelu(h1, approximate=True)
        h2 = (jnp.dot(h1.astype(jnp.bfloat16), w2_ref[l],
                      preferred_element_type=jnp.float32) + b2)
        x = _layernorm(x + h2, ln2_g, ln2_b)

    # ---- pooler: tanh(CLS @ Wp + bp) on the [CLS] token of each batch element ----
    cls = x.reshape(B, S, H)[:, 0, :]                            # [B, H]
    o_ref[...] = jnp.tanh(
        jnp.dot(cls.astype(jnp.bfloat16), wp_ref[...],
                preferred_element_type=jnp.float32) + pool_b)


# ------------------------------ wrapper ----------------------------------------
def _full_spec(a):
    # full-array block, single (no-grid) invocation
    nd = a.ndim
    return pl.BlockSpec(a.shape, lambda *_, _nd=nd: (0,) * _nd)


def zero_tc_forward(input_ids, params):
    # TODO(synk): HF tokenizer (string -> ids) and the padding attention-mask have no
    # Pallas equivalent; this takes pre-tokenized ids and assumes no padding.
    ids = input_ids.reshape(B * S, 1).astype(jnp.int32)
    args = [ids, params["tables"],
            params["wqkv"], params["bqkv"], params["wo"],
            params["w1"], params["b1"], params["w2"],
            params["layer_vecs"], params["pooler_w"]]

    pooled = pl.pallas_call(
        encoder_kernel,
        out_shape=jax.ShapeDtypeStruct((B, H), jnp.float32),
        in_specs=[_full_spec(a) for a in args],
        out_specs=pl.BlockSpec((B, H), lambda: (0, 0)),
    )(*args)
    return pooled                                                # pooler_output


# ------------------------- deterministic parameter init ------------------------
def init_params(key):
    def nrm(k, shape, scale=0.02):
        return (scale * jax.random.normal(k, shape)).astype(jnp.float32)

    keys = iter(jax.random.split(key, 64))
    L = NUM_LAYERS

    word_emb = nrm(next(keys), (VOCAB, H))
    pos_emb = nrm(next(keys), (S, H))
    type_emb = nrm(next(keys), (2, H))
    emb_ln_g = jnp.ones((1, H), jnp.float32)
    emb_ln_b = jnp.zeros((1, H), jnp.float32)

    wqkv = nrm(next(keys), (L, H, 3 * H))            # Wq|Wk|Wv fused
    bqkv = jnp.zeros((L, 1, 3 * H), jnp.float32)
    # fold attention scale 1/sqrt(D_HEAD) into the Q projection (weights + bias)
    scale = 1.0 / (D_HEAD ** 0.5)
    wqkv = wqkv.at[:, :, 0:H].multiply(scale)
    bqkv = bqkv.at[:, :, 0:H].multiply(scale)

    wo = nrm(next(keys), (L, H, H))
    bo = jnp.zeros((L, 1, H), jnp.float32)
    ln1_g = jnp.ones((L, 1, H), jnp.float32)
    ln1_b = jnp.zeros((L, 1, H), jnp.float32)
    w1 = nrm(next(keys), (L, H, INTER))
    b1 = jnp.zeros((L, 1, INTER), jnp.float32)
    w2 = nrm(next(keys), (L, INTER, H))
    b2 = jnp.zeros((L, 1, H), jnp.float32)
    ln2_g = jnp.ones((L, 1, H), jnp.float32)
    ln2_b = jnp.zeros((L, 1, H), jnp.float32)
    pooler_w = nrm(next(keys), (H, H))
    pooler_b = jnp.zeros((1, H), jnp.float32)

    # packed global table: word | pos | type | emb_ln_g | emb_ln_b | pooler_b
    tables = jnp.concatenate(
        [word_emb, pos_emb, type_emb, emb_ln_g, emb_ln_b, pooler_b], axis=0)
    assert tables.shape == (N_TABLE_ROWS, H)
    # packed per-layer H-width vectors: bo | b2 | ln1_g | ln1_b | ln2_g | ln2_b
    layer_vecs = jnp.concatenate([bo, b2, ln1_g, ln1_b, ln2_g, ln2_b], axis=1)

    params = {
        "tables": tables,                            # f32
        "wqkv": wqkv.astype(jnp.bfloat16),           # bf16 MXU operands
        "bqkv": bqkv,                                # f32
        "wo": wo.astype(jnp.bfloat16),
        "w1": w1.astype(jnp.bfloat16),
        "b1": b1,
        "w2": w2.astype(jnp.bfloat16),
        "layer_vecs": layer_vecs,                    # [L, 6, H] f32
        "pooler_w": pooler_w.astype(jnp.bfloat16),
        # self.fc (unused in forward) — kept for fidelity to __init__:
        "fc_w": nrm(next(keys), (H, NUM_CLASS)),
        "fc_b": jnp.zeros((1, NUM_CLASS), jnp.float32),
    }
    return params


if __name__ == "__main__":
    key = jax.random.PRNGKey(0)
    k_ids, k_params = jax.random.split(key)
    input_ids = jax.random.randint(k_ids, (B, S), 0, VOCAB, dtype=jnp.int32)
    params = init_params(k_params)

    forward = jax.jit(zero_tc_forward)
    out = forward(input_ids, params)
    out = jax.block_until_ready(out)
    assert out.shape == (B, H) and out.dtype == jnp.float32
    assert bool(jnp.all(jnp.isfinite(out)))
    print("KERNEL_OK")
</pallas_src>

<mosaic_0001>
module attributes {stable_mosaic.version = 11 : i64} {
  func.func @encoder_kernel(%arg0: memref<16x1xi32, #tpu.memory_space<vmem>>, %arg1: memref<141x32xf32, #tpu.memory_space<vmem>>, %arg2: memref<2x32x96xbf16, #tpu.memory_space<vmem>>, %arg3: memref<2x1x96xf32, #tpu.memory_space<vmem>>, %arg4: memref<2x32x32xbf16, #tpu.memory_space<vmem>>, %arg5: memref<2x32x128xbf16, #tpu.memory_space<vmem>>, %arg6: memref<2x1x128xf32, #tpu.memory_space<vmem>>, %arg7: memref<2x128x32xbf16, #tpu.memory_space<vmem>>, %arg8: memref<2x6x32xf32, #tpu.memory_space<vmem>>, %arg9: memref<32x32xbf16, #tpu.memory_space<vmem>>, %arg10: memref<2x32xf32, #tpu.memory_space<vmem>>) attributes {dimension_semantics = [], scalar_prefetch = 0 : i64, scratch_operands = 0 : i64, tpu.core_type = #tpu.core_type<tc>} {
    %c0 = arith.constant 0 : index
    %c0_0 = arith.constant 0 : index
    %0 = vector.load %arg1[%c0, %c0_0] : memref<141x32xf32, #tpu.memory_space<vmem>>, vector<128x32xf32>
    %c128 = arith.constant 128 : index
    %c0_1 = arith.constant 0 : index
    %1 = vector.load %arg1[%c128, %c0_1] : memref<141x32xf32, #tpu.memory_space<vmem>>, vector<8x32xf32>
    %c136 = arith.constant 136 : index
    %c0_2 = arith.constant 0 : index
    %2 = vector.load %arg1[%c136, %c0_2] : memref<141x32xf32, #tpu.memory_space<vmem>>, vector<1x32xf32>
    %c138 = arith.constant 138 : index
    %c0_3 = arith.constant 0 : index
    %3 = vector.load %arg1[%c138, %c0_3] : memref<141x32xf32, #tpu.memory_space<vmem>>, vector<1x32xf32>
    %c139 = arith.constant 139 : index
    %c0_4 = arith.constant 0 : index
    %4 = vector.load %arg1[%c139, %c0_4] : memref<141x32xf32, #tpu.memory_space<vmem>>, vector<1x32xf32>
    %c140 = arith.constant 140 : index
    %c0_5 = arith.constant 0 : index
    %5 = vector.load %arg1[%c140, %c0_5] : memref<141x32xf32, #tpu.memory_space<vmem>>, vector<1x32xf32>
    %c0_6 = arith.constant 0 : index
    %c0_7 = arith.constant 0 : index
    %6 = vector.load %arg0[%c0_6, %c0_7] : memref<16x1xi32, #tpu.memory_space<vmem>>, vector<16x1xi32>
    %7 = tpu.iota {dimensions = array<i32: 1>} : vector<16x128xi32>
    %8 = vector.broadcast %6 : vector<16x1xi32> to vector<16x128xi32>
    %9 = arith.cmpi eq, %8, %7 : vector<16x128xi32>
    %10 = arith.extui %9 : vector<16x128xi1> to vector<16x128xi32>
    %11 = arith.sitofp %10 : vector<16x128xi32> to vector<16x128xf32>
    %cst = arith.constant dense<0.000000e+00> : vector<16x32xf32>
    %12 = tpu.matmul %11, %0, %cst {dimension_numbers = #tpu.dot_dimension_numbers<[1], [0], [0], [1], [0, 0, 1, 1], [], []>} : vector<16x128xf32>, vector<128x32xf32>, vector<16x32xf32> -> vector<16x32xf32>
    %13 = tpu.concatenate %1, %1 in 0 : vector<8x32xf32>, vector<8x32xf32> -> vector<16x32xf32>
    %14 = arith.addf %12, %13 : vector<16x32xf32>
    %15 = vector.broadcast %2 : vector<1x32xf32> to vector<16x32xf32>
    %16 = arith.addf %14, %15 : vector<16x32xf32>
    %cst_8 = arith.constant dense<0.000000e+00> : vector<16xf32>
    %17 = vector.multi_reduction <add>, %16, %cst_8 [1] : vector<16x32xf32> to vector<16xf32>
    %18 = vector.shape_cast %17 : vector<16xf32> to vector<16x1xf32>
    %cst_9 = arith.constant 3.200000e+01 : f32
    %19 = vector.broadcast %cst_9 : f32 to vector<16x1xf32>
    %20 = arith.divf %18, %19 : vector<16x1xf32>
    %21 = vector.broadcast %20 : vector<16x1xf32> to vector<16x32xf32>
    %22 = arith.subf %16, %21 : vector<16x32xf32>
    %23 = arith.mulf %22, %22 : vector<16x32xf32>
    %cst_10 = arith.constant dense<0.000000e+00> : vector<16xf32>
    %24 = vector.multi_reduction <add>, %23, %cst_10 [1] : vector<16x32xf32> to vector<16xf32>
    %25 = vector.shape_cast %24 : vector<16xf32> to vector<16x1xf32>
    %cst_11 = arith.constant 3.200000e+01 : f32
    %26 = vector.broadcast %cst_11 : f32 to vector<16x1xf32>
    %27 = arith.divf %25, %26 : vector<16x1xf32>
    %28 = vector.broadcast %20 : vector<16x1xf32> to vector<16x32xf32>
    %29 = arith.subf %16, %28 : vector<16x32xf32>
    %cst_12 = arith.constant 9.99999996E-13 : f32
    %30 = vector.broadcast %cst_12 : f32 to vector<16x1xf32>
    %31 = arith.addf %27, %30 : vector<16x1xf32>
    %32 = math.rsqrt %31 : vector<16x1xf32>
    %33 = vector.broadcast %32 : vector<16x1xf32> to vector<16x32xf32>
    %34 = arith.mulf %29, %33 : vector<16x32xf32>
    %35 = vector.broadcast %3 : vector<1x32xf32> to vector<16x32xf32>
    %36 = arith.mulf %34, %35 : vector<16x32xf32>
    %37 = vector.broadcast %4 : vector<1x32xf32> to vector<16x32xf32>
    %38 = arith.addf %36, %37 : vector<16x32xf32>
    %c0_13 = arith.constant 0 : index
    %c0_14 = arith.constant 0 : index
    %c0_15 = arith.constant 0 : index
    %39 = vector.load %arg8[%c0_13, %c0_14, %c0_15] : memref<2x6x32xf32, #tpu.memory_space<vmem>>, vector<1x6x32xf32>
    %40 = vector.shape_cast %39 : vector<1x6x32xf32> to vector<6x32xf32>
    %41 = vector.extract_strided_slice %40 {offsets = [0, 0], sizes = [1, 32], strides = [1, 1]} : vector<6x32xf32> to vector<1x32xf32>
    %42 = vector.extract_strided_slice %40 {offsets = [1, 0], sizes = [1, 32], strides = [1, 1]} : vector<6x32xf32> to vector<1x32xf32>
    %43 = vector.extract_strided_slice %40 {offsets = [2, 0], sizes = [1, 32], strides = [1, 1]} : vector<6x32xf32> to vector<1x32xf32>
    %44 = vector.extract_strided_slice %40 {offsets = [3, 0], sizes = [1, 32], strides = [1, 1]} : vector<6x32xf32> to vector<1x32xf32>
    %45 = vector.extract_strided_slice %40 {offsets = [4, 0], sizes = [1, 32], strides = [1, 1]} : vector<6x32xf32> to vector<1x32xf32>
    %46 = vector.extract_strided_slice %40 {offsets = [5, 0], sizes = [1, 32], strides = [1, 1]} : vector<6x32xf32> to vector<1x32xf32>
    %47 = arith.truncf %38 : vector<16x32xf32> to vector<16x32xbf16>
    %c0_16 = arith.constant 0 : index
    %c0_17 = arith.constant 0 : index
    %c0_18 = arith.constant 0 : index
    %48 = vector.load %arg2[%c0_16, %c0_17, %c0_18] : memref<2x32x96xbf16, #tpu.memory_space<vmem>>, vector<1x32x96xbf16>
    %49 = vector.shape_cast %48 : vector<1x32x96xbf16> to vector<32x96xbf16>
    %cst_19 = arith.constant dense<0.000000e+00> : vector<16x96xf32>
    %50 = tpu.matmul %47, %49, %cst_19 {dimension_numbers = #tpu.dot_dimension_numbers<[1], [0], [0], [1], [0, 0, 1, 1], [], []>} : vector<16x32xbf16>, vector<32x96xbf16>, vector<16x96xf32> -> vector<16x96xf32>
    %c0_20 = arith.constant 0 : index
    %c0_21 = arith.constant 0 : index
    %c0_22 = arith.constant 0 : index
    %51 = vector.load %arg3[%c0_20, %c0_21, %c0_22] : memref<2x1x96xf32, #tpu.memory_space<vmem>>, vector<1x1x96xf32>
    %52 = vector.shape_cast %51 : vector<1x1x96xf32> to vector<1x96xf32>
    %53 = vector.broadcast %52 : vector<1x96xf32> to vector<16x96xf32>
    %54 = arith.addf %50, %53 : vector<16x96xf32>
    %55 = vector.extract_strided_slice %54 {offsets = [0, 0], sizes = [16, 8], strides = [1, 1]} : vector<16x96xf32> to vector<16x8xf32>
    %56 = vector.shape_cast %55 : vector<16x8xf32> to vector<2x8x8xf32>
    %57 = vector.extract_strided_slice %54 {offsets = [0, 8], sizes = [16, 8], strides = [1, 1]} : vector<16x96xf32> to vector<16x8xf32>
    %58 = vector.shape_cast %57 : vector<16x8xf32> to vector<2x8x8xf32>
    %59 = vector.extract_strided_slice %54 {offsets = [0, 16], sizes = [16, 8], strides = [1, 1]} : vector<16x96xf32> to vector<16x8xf32>
    %60 = vector.shape_cast %59 : vector<16x8xf32> to vector<2x8x8xf32>
    %61 = vector.extract_strided_slice %54 {offsets = [0, 24], sizes = [16, 8], strides = [1, 1]} : vector<16x96xf32> to vector<16x8xf32>
    %62 = vector.shape_cast %61 : vector<16x8xf32> to vector<2x8x8xf32>
    %63 = tpu.concatenate %56, %58, %60, %62 in 0 : vector<2x8x8xf32>, vector<2x8x8xf32>, vector<2x8x8xf32>, vector<2x8x8xf32> -> vector<8x8x8xf32>
    %64 = vector.extract_strided_slice %54 {offsets = [0, 32], sizes = [16, 8], strides = [1, 1]} : vector<16x96xf32> to vector<16x8xf32>
    %65 = vector.shape_cast %64 : vector<16x8xf32> to vector<2x8x8xf32>
    %66 = vector.extract_strided_slice %54 {offsets = [0, 40], sizes = [16, 8], strides = [1, 1]} : vector<16x96xf32> to vector<16x8xf32>
    %67 = vector.shape_cast %66 : vector<16x8xf32> to vector<2x8x8xf32>
    %68 = vector.extract_strided_slice %54 {offsets = [0, 48], sizes = [16, 8], strides = [1, 1]} : vector<16x96xf32> to vector<16x8xf32>
    %69 = vector.shape_cast %68 : vector<16x8xf32> to vector<2x8x8xf32>
    %70 = vector.extract_strided_slice %54 {offsets = [0, 56], sizes = [16, 8], strides = [1, 1]} : vector<16x96xf32> to vector<16x8xf32>
    %71 = vector.shape_cast %70 : vector<16x8xf32> to vector<2x8x8xf32>
    %72 = tpu.concatenate %65, %67, %69, %71 in 0 : vector<2x8x8xf32>, vector<2x8x8xf32>, vector<2x8x8xf32>, vector<2x8x8xf32> -> vector<8x8x8xf32>
    %73 = vector.extract_strided_slice %54 {offsets = [0, 64], sizes = [16, 8], strides = [1, 1]} : vector<16x96xf32> to vector<16x8xf32>
    %74 = vector.shape_cast %73 : vector<16x8xf32> to vector<2x8x8xf32>
    %75 = vector.extract_strided_slice %54 {offsets = [0, 72], sizes = [16, 8], strides = [1, 1]} : vector<16x96xf32> to vector<16x8xf32>
    %76 = vector.shape_cast %75 : vector<16x8xf32> to vector<2x8x8xf32>
    %77 = vector.extract_strided_slice %54 {offsets = [0, 80], sizes = [16, 8], strides = [1, 1]} : vector<16x96xf32> to vector<16x8xf32>
    %78 = vector.shape_cast %77 : vector<16x8xf32> to vector<2x8x8xf32>
    %79 = vector.extract_strided_slice %54 {offsets = [0, 88], sizes = [16, 8], strides = [1, 1]} : vector<16x96xf32> to vector<16x8xf32>
    %80 = vector.shape_cast %79 : vector<16x8xf32> to vector<2x8x8xf32>
    %81 = tpu.concatenate %74, %76, %78, %80 in 0 : vector<2x8x8xf32>, vector<2x8x8xf32>, vector<2x8x8xf32>, vector<2x8x8xf32> -> vector<8x8x8xf32>
    "tpu.trace_start"() <{level = 10 : i32, message = "bqd,bkd->bqk"}> : () -> ()
    %cst_23 = arith.constant dense<0.000000e+00> : vector<8x8x8xf32>
    %82 = tpu.matmul %63, %72, %cst_23 {dimension_numbers = #tpu.dot_dimension_numbers<[2], [2], [1], [1], [0, 0, 0, 1, 1, 1], [0], [0]>} : vector<8x8x8xf32>, vector<8x8x8xf32>, vector<8x8x8xf32> -> vector<8x8x8xf32>
    "tpu.trace_stop"() : () -> ()
    %cst_24 = arith.constant dense<0xFF800000> : vector<8x8xf32>
    %83 = vector.multi_reduction <maximumf>, %82, %cst_24 [2] : vector<8x8x8xf32> to vector<8x8xf32>
    %84 = vector.shape_cast %83 : vector<8x8xf32> to vector<8x8x1xf32>
    %85 = vector.broadcast %84 : vector<8x8x1xf32> to vector<8x8x8xf32>
    %86 = arith.subf %82, %85 : vector<8x8x8xf32>
    %87 = math.exp %86 : vector<8x8x8xf32>
    %cst_25 = arith.constant dense<0.000000e+00> : vector<8x8xf32>
    %88 = vector.multi_reduction <add>, %87, %cst_25 [2] : vector<8x8x8xf32> to vector<8x8xf32>
    %89 = vector.shape_cast %88 : vector<8x8xf32> to vector<8x8x1xf32>
    %90 = tpu.reciprocal %89 {approx = true} : vector<8x8x1xf32> -> vector<8x8x1xf32>
    %91 = vector.broadcast %90 : vector<8x8x1xf32> to vector<8x8x8xf32>
    %92 = arith.mulf %87, %91 : vector<8x8x8xf32>
    "tpu.trace_start"() <{level = 10 : i32, message = "bqk,bkd->bqd"}> : () -> ()
    %cst_26 = arith.constant dense<0.000000e+00> : vector<8x8x8xf32>
    %93 = tpu.matmul %92, %81, %cst_26 {dimension_numbers = #tpu.dot_dimension_numbers<[2], [1], [1], [2], [0, 0, 0, 1, 1, 2], [0], [0]>} : vector<8x8x8xf32>, vector<8x8x8xf32>, vector<8x8x8xf32> -> vector<8x8x8xf32>
    "tpu.trace_stop"() : () -> ()
    %94 = vector.extract_strided_slice %93 {offsets = [0, 0, 0], sizes = [2, 8, 8], strides = [1, 1, 1]} : vector<8x8x8xf32> to vector<2x8x8xf32>
    %95 = vector.shape_cast %94 : vector<2x8x8xf32> to vector<16x8xf32>
    %96 = vector.extract_strided_slice %93 {offsets = [2, 0, 0], sizes = [2, 8, 8], strides = [1, 1, 1]} : vector<8x8x8xf32> to vector<2x8x8xf32>
    %97 = vector.shape_cast %96 : vector<2x8x8xf32> to vector<16x8xf32>
    %98 = vector.extract_strided_slice %93 {offsets = [4, 0, 0], sizes = [2, 8, 8], strides = [1, 1, 1]} : vector<8x8x8xf32> to vector<2x8x8xf32>
    %99 = vector.shape_cast %98 : vector<2x8x8xf32> to vector<16x8xf32>
    %100 = vector.extract_strided_slice %93 {offsets = [6, 0, 0], sizes = [2, 8, 8], strides = [1, 1, 1]} : vector<8x8x8xf32> to vector<2x8x8xf32>
    %101 = vector.shape_cast %100 : vector<2x8x8xf32> to vector<16x8xf32>
    %102 = tpu.concatenate %95, %97, %99, %101 in 1 : vector<16x8xf32>, vector<16x8xf32>, vector<16x8xf32>, vector<16x8xf32> -> vector<16x32xf32>
    %103 = arith.truncf %102 : vector<16x32xf32> to vector<16x32xbf16>
    %c0_27 = arith.constant 0 : index
    %c0_28 = arith.constant 0 : index
    %c0_29 = arith.constant 0 : index
    %104 = vector.load %arg4[%c0_27, %c0_28, %c0_29] : memref<2x32x32xbf16, #tpu.memory_space<vmem>>, vector<1x32x32xbf16>
    %105 = vector.shape_cast %104 : vector<1x32x32xbf16> to vector<32x32xbf16>
    %cst_30 = arith.constant dense<0.000000e+00> : vector<16x32xf32>
    %106 = tpu.matmul %103, %105, %cst_30 {dimension_numbers = #tpu.dot_dimension_numbers<[1], [0], [0], [1], [0, 0, 1, 1], [], []>} : vector<16x32xbf16>, vector<32x32xbf16>, vector<16x32xf32> -> vector<16x32xf32>
    %107 = vector.broadcast %41 : vector<1x32xf32> to vector<16x32xf32>
    %108 = arith.addf %106, %107 : vector<16x32xf32>
    %109 = arith.addf %38, %108 : vector<16x32xf32>
    %cst_31 = arith.constant dense<0.000000e+00> : vector<16xf32>
    %110 = vector.multi_reduction <add>, %109, %cst_31 [1] : vector<16x32xf32> to vector<16xf32>
    %111 = vector.shape_cast %110 : vector<16xf32> to vector<16x1xf32>
    %cst_32 = arith.constant 3.200000e+01 : f32
    %112 = vector.broadcast %cst_32 : f32 to vector<16x1xf32>
    %113 = arith.divf %111, %112 : vector<16x1xf32>
    %114 = vector.broadcast %113 : vector<16x1xf32> to vector<16x32xf32>
    %115 = arith.subf %109, %114 : vector<16x32xf32>
    %116 = arith.mulf %115, %115 : vector<16x32xf32>
    %cst_33 = arith.constant dense<0.000000e+00> : vector<16xf32>
    %117 = vector.multi_reduction <add>, %116, %cst_33 [1] : vector<16x32xf32> to vector<16xf32>
    %118 = vector.shape_cast %117 : vector<16xf32> to vector<16x1xf32>
    %cst_34 = arith.constant 3.200000e+01 : f32
    %119 = vector.broadcast %cst_34 : f32 to vector<16x1xf32>
    %120 = arith.divf %118, %119 : vector<16x1xf32>
    %121 = vector.broadcast %113 : vector<16x1xf32> to vector<16x32xf32>
    %122 = arith.subf %109, %121 : vector<16x32xf32>
    %cst_35 = arith.constant 9.99999996E-13 : f32
    %123 = vector.broadcast %cst_35 : f32 to vector<16x1xf32>
    %124 = arith.addf %120, %123 : vector<16x1xf32>
    %125 = math.rsqrt %124 : vector<16x1xf32>
    %126 = vector.broadcast %125 : vector<16x1xf32> to vector<16x32xf32>
    %127 = arith.mulf %122, %126 : vector<16x32xf32>
    %128 = vector.broadcast %43 : vector<1x32xf32> to vector<16x32xf32>
    %129 = arith.mulf %127, %128 : vector<16x32xf32>
    %130 = vector.broadcast %44 : vector<1x32xf32> to vector<16x32xf32>
    %131 = arith.addf %129, %130 : vector<16x32xf32>
    %132 = arith.truncf %131 : vector<16x32xf32> to vector<16x32xbf16>
    %c0_36 = arith.constant 0 : index
    %c0_37 = arith.constant 0 : index
    %c0_38 = arith.constant 0 : index
    %133 = vector.load %arg5[%c0_36, %c0_37, %c0_38] : memref<2x32x128xbf16, #tpu.memory_space<vmem>>, vector<1x32x128xbf16>
    %134 = vector.shape_cast %133 : vector<1x32x128xbf16> to vector<32x128xbf16>
    %cst_39 = arith.constant dense<0.000000e+00> : vector<16x128xf32>
    %135 = tpu.matmul %132, %134, %cst_39 {dimension_numbers = #tpu.dot_dimension_numbers<[1], [0], [0], [1], [0, 0, 1, 1], [], []>} : vector<16x32xbf16>, vector<32x128xbf16>, vector<16x128xf32> -> vector<16x128xf32>
    %c0_40 = arith.constant 0 : index
    %c0_41 = arith.constant 0 : index
    %c0_42 = arith.constant 0 : index
    %136 = vector.load %arg6[%c0_40, %c0_41, %c0_42] : memref<2x1x128xf32, #tpu.memory_space<vmem>>, vector<1x1x128xf32>
    %137 = vector.shape_cast %136 : vector<1x1x128xf32> to vector<1x128xf32>
    %138 = vector.broadcast %137 : vector<1x128xf32> to vector<16x128xf32>
    %139 = arith.addf %135, %138 : vector<16x128xf32>
    %140 = arith.mulf %139, %139 : vector<16x128xf32>
    %141 = arith.mulf %139, %140 : vector<16x128xf32>
    %cst_43 = arith.constant 4.471500e-02 : f32
    %142 = vector.broadcast %cst_43 : f32 to vector<16x128xf32>
    %143 = arith.mulf %142, %141 : vector<16x128xf32>
    %144 = arith.addf %139, %143 : vector<16x128xf32>
    %cst_44 = arith.constant 0.797884583 : f32
    %145 = vector.broadcast %cst_44 : f32 to vector<16x128xf32>
    %146 = arith.mulf %145, %144 : vector<16x128xf32>
    %147 = math.tanh %146 : vector<16x128xf32>
    %cst_45 = arith.constant 1.000000e+00 : f32
    %148 = vector.broadcast %cst_45 : f32 to vector<16x128xf32>
    %149 = arith.addf %148, %147 : vector<16x128xf32>
    %cst_46 = arith.constant 5.000000e-01 : f32
    %150 = vector.broadcast %cst_46 : f32 to vector<16x128xf32>
    %151 = arith.mulf %150, %149 : vector<16x128xf32>
    %152 = arith.mulf %139, %151 : vector<16x128xf32>
    %153 = arith.truncf %152 : vector<16x128xf32> to vector<16x128xbf16>
    %c0_47 = arith.constant 0 : index
    %c0_48 = arith.constant 0 : index
    %c0_49 = arith.constant 0 : index
    %154 = vector.load %arg7[%c0_47, %c0_48, %c0_49] : memref<2x128x32xbf16, #tpu.memory_space<vmem>>, vector<1x128x32xbf16>
    %155 = vector.shape_cast %154 : vector<1x128x32xbf16> to vector<128x32xbf16>
    %cst_50 = arith.constant dense<0.000000e+00> : vector<16x32xf32>
    %156 = tpu.matmul %153, %155, %cst_50 {dimension_numbers = #tpu.dot_dimension_numbers<[1], [0], [0], [1], [0, 0, 1, 1], [], []>} : vector<16x128xbf16>, vector<128x32xbf16>, vector<16x32xf32> -> vector<16x32xf32>
    %157 = vector.broadcast %42 : vector<1x32xf32> to vector<16x32xf32>
    %158 = arith.addf %156, %157 : vector<16x32xf32>
    %159 = arith.addf %131, %158 : vector<16x32xf32>
    %cst_51 = arith.constant dense<0.000000e+00> : vector<16xf32>
    %160 = vector.multi_reduction <add>, %159, %cst_51 [1] : vector<16x32xf32> to vector<16xf32>
    %161 = vector.shape_cast %160 : vector<16xf32> to vector<16x1xf32>
    %cst_52 = arith.constant 3.200000e+01 : f32
    %162 = vector.broadcast %cst_52 : f32 to vector<16x1xf32>
    %163 = arith.divf %161, %162 : vector<16x1xf32>
    %164 = vector.broadcast %163 : vector<16x1xf32> to vector<16x32xf32>
    %165 = arith.subf %159, %164 : vector<16x32xf32>
    %166 = arith.mulf %165, %165 : vector<16x32xf32>
    %cst_53 = arith.constant dense<0.000000e+00> : vector<16xf32>
    %167 = vector.multi_reduction <add>, %166, %cst_53 [1] : vector<16x32xf32> to vector<16xf32>
    %168 = vector.shape_cast %167 : vector<16xf32> to vector<16x1xf32>
    %cst_54 = arith.constant 3.200000e+01 : f32
    %169 = vector.broadcast %cst_54 : f32 to vector<16x1xf32>
    %170 = arith.divf %168, %169 : vector<16x1xf32>
    %171 = vector.broadcast %163 : vector<16x1xf32> to vector<16x32xf32>
    %172 = arith.subf %159, %171 : vector<16x32xf32>
    %cst_55 = arith.constant 9.99999996E-13 : f32
    %173 = vector.broadcast %cst_55 : f32 to vector<16x1xf32>
    %174 = arith.addf %170, %173 : vector<16x1xf32>
    %175 = math.rsqrt %174 : vector<16x1xf32>
    %176 = vector.broadcast %175 : vector<16x1xf32> to vector<16x32xf32>
    %177 = arith.mulf %172, %176 : vector<16x32xf32>
    %178 = vector.broadcast %45 : vector<1x32xf32> to vector<16x32xf32>
    %179 = arith.mulf %177, %178 : vector<16x32xf32>
    %180 = vector.broadcast %46 : vector<1x32xf32> to vector<16x32xf32>
    %181 = arith.addf %179, %180 : vector<16x32xf32>
    %c1 = arith.constant 1 : index
    %c0_56 = arith.constant 0 : index
    %c0_57 = arith.constant 0 : index
    %182 = vector.load %arg8[%c1, %c0_56, %c0_57] : memref<2x6x32xf32, #tpu.memory_space<vmem>>, vector<1x6x32xf32>
    %183 = vector.shape_cast %182 : vector<1x6x32xf32> to vector<6x32xf32>
    %184 = vector.extract_strided_slice %183 {offsets = [0, 0], sizes = [1, 32], strides = [1, 1]} : vector<6x32xf32> to vector<1x32xf32>
    %185 = vector.extract_strided_slice %183 {offsets = [1, 0], sizes = [1, 32], strides = [1, 1]} : vector<6x32xf32> to vector<1x32xf32>
    %186 = vector.extract_strided_slice %183 {offsets = [2, 0], sizes = [1, 32], strides = [1, 1]} : vector<6x32xf32> to vector<1x32xf32>
    %187 = vector.extract_strided_slice %183 {offsets = [3, 0], sizes = [1, 32], strides = [1, 1]} : vector<6x32xf32> to vector<1x32xf32>
    %188 = vector.extract_strided_slice %183 {offsets = [4, 0], sizes = [1, 32], strides = [1, 1]} : vector<6x32xf32> to vector<1x32xf32>
    %189 = vector.extract_strided_slice %183 {offsets = [5, 0], sizes = [1, 32], strides = [1, 1]} : vector<6x32xf32> to vector<1x32xf32>
    %190 = arith.truncf %181 : vector<16x32xf32> to vector<16x32xbf16>
    %c1_58 = arith.constant 1 : index
    %c0_59 = arith.constant 0 : index
    %c0_60 = arith.constant 0 : index
    %191 = vector.load %arg2[%c1_58, %c0_59, %c0_60] : memref<2x32x96xbf16, #tpu.memory_space<vmem>>, vector<1x32x96xbf16>
    %192 = vector.shape_cast %191 : vector<1x32x96xbf16> to vector<32x96xbf16>
    %cst_61 = arith.constant dense<0.000000e+00> : vector<16x96xf32>
    %193 = tpu.matmul %190, %192, %cst_61 {dimension_numbers = #tpu.dot_dimension_numbers<[1], [0], [0], [1], [0, 0, 1, 1], [], []>} : vector<16x32xbf16>, vector<32x96xbf16>, vector<16x96xf32> -> vector<16x96xf32>
    %c1_62 = arith.constant 1 : index
    %c0_63 = arith.constant 0 : index
    %c0_64 = arith.constant 0 : index
    %194 = vector.load %arg3[%c1_62, %c0_63, %c0_64] : memref<2x1x96xf32, #tpu.memory_space<vmem>>, vector<1x1x96xf32>
    %195 = vector.shape_cast %194 : vector<1x1x96xf32> to vector<1x96xf32>
    %196 = vector.broadcast %195 : vector<1x96xf32> to vector<16x96xf32>
    %197 = arith.addf %193, %196 : vector<16x96xf32>
    %198 = vector.extract_strided_slice %197 {offsets = [0, 0], sizes = [16, 8], strides = [1, 1]} : vector<16x96xf32> to vector<16x8xf32>
    %199 = vector.shape_cast %198 : vector<16x8xf32> to vector<2x8x8xf32>
    %200 = vector.extract_strided_slice %197 {offsets = [0, 8], sizes = [16, 8], strides = [1, 1]} : vector<16x96xf32> to vector<16x8xf32>
    %201 = vector.shape_cast %200 : vector<16x8xf32> to vector<2x8x8xf32>
    %202 = vector.extract_strided_slice %197 {offsets = [0, 16], sizes = [16, 8], strides = [1, 1]} : vector<16x96xf32> to vector<16x8xf32>
    %203 = vector.shape_cast %202 : vector<16x8xf32> to vector<2x8x8xf32>
    %204 = vector.extract_strided_slice %197 {offsets = [0, 24], sizes = [16, 8], strides = [1, 1]} : vector<16x96xf32> to vector<16x8xf32>
    %205 = vector.shape_cast %204 : vector<16x8xf32> to vector<2x8x8xf32>
    %206 = tpu.concatenate %199, %201, %203, %205 in 0 : vector<2x8x8xf32>, vector<2x8x8xf32>, vector<2x8x8xf32>, vector<2x8x8xf32> -> vector<8x8x8xf32>
    %207 = vector.extract_strided_slice %197 {offsets = [0, 32], sizes = [16, 8], strides = [1, 1]} : vector<16x96xf32> to vector<16x8xf32>
    %208 = vector.shape_cast %207 : vector<16x8xf32> to vector<2x8x8xf32>
    %209 = vector.extract_strided_slice %197 {offsets = [0, 40], sizes = [16, 8], strides = [1, 1]} : vector<16x96xf32> to vector<16x8xf32>
    %210 = vector.shape_cast %209 : vector<16x8xf32> to vector<2x8x8xf32>
    %211 = vector.extract_strided_slice %197 {offsets = [0, 48], sizes = [16, 8], strides = [1, 1]} : vector<16x96xf32> to vector<16x8xf32>
    %212 = vector.shape_cast %211 : vector<16x8xf32> to vector<2x8x8xf32>
    %213 = vector.extract_strided_slice %197 {offsets = [0, 56], sizes = [16, 8], strides = [1, 1]} : vector<16x96xf32> to vector<16x8xf32>
    %214 = vector.shape_cast %213 : vector<16x8xf32> to vector<2x8x8xf32>
    %215 = tpu.concatenate %208, %210, %212, %214 in 0 : vector<2x8x8xf32>, vector<2x8x8xf32>, vector<2x8x8xf32>, vector<2x8x8xf32> -> vector<8x8x8xf32>
    %216 = vector.extract_strided_slice %197 {offsets = [0, 64], sizes = [16, 8], strides = [1, 1]} : vector<16x96xf32> to vector<16x8xf32>
    %217 = vector.shape_cast %216 : vector<16x8xf32> to vector<2x8x8xf32>
    %218 = vector.extract_strided_slice %197 {offsets = [0, 72], sizes = [16, 8], strides = [1, 1]} : vector<16x96xf32> to vector<16x8xf32>
    %219 = vector.shape_cast %218 : vector<16x8xf32> to vector<2x8x8xf32>
    %220 = vector.extract_strided_slice %197 {offsets = [0, 80], sizes = [16, 8], strides = [1, 1]} : vector<16x96xf32> to vector<16x8xf32>
    %221 = vector.shape_cast %220 : vector<16x8xf32> to vector<2x8x8xf32>
    %222 = vector.extract_strided_slice %197 {offsets = [0, 88], sizes = [16, 8], strides = [1, 1]} : vector<16x96xf32> to vector<16x8xf32>
    %223 = vector.shape_cast %222 : vector<16x8xf32> to vector<2x8x8xf32>
    %224 = tpu.concatenate %217, %219, %221, %223 in 0 : vector<2x8x8xf32>, vector<2x8x8xf32>, vector<2x8x8xf32>, vector<2x8x8xf32> -> vector<8x8x8xf32>
    "tpu.trace_start"() <{level = 10 : i32, message = "bqd,bkd->bqk"}> : () -> ()
    %cst_65 = arith.constant dense<0.000000e+00> : vector<8x8x8xf32>
    %225 = tpu.matmul %206, %215, %cst_65 {dimension_numbers = #tpu.dot_dimension_numbers<[2], [2], [1], [1], [0, 0, 0, 1, 1, 1], [0], [0]>} : vector<8x8x8xf32>, vector<8x8x8xf32>, vector<8x8x8xf32> -> vector<8x8x8xf32>
    "tpu.trace_stop"() : () -> ()
    %cst_66 = arith.constant dense<0xFF800000> : vector<8x8xf32>
    %226 = vector.multi_reduction <maximumf>, %225, %cst_66 [2] : vector<8x8x8xf32> to vector<8x8xf32>
    %227 = vector.shape_cast %226 : vector<8x8xf32> to vector<8x8x1xf32>
    %228 = vector.broadcast %227 : vector<8x8x1xf32> to vector<8x8x8xf32>
    %229 = arith.subf %225, %228 : vector<8x8x8xf32>
    %230 = math.exp %229 : vector<8x8x8xf32>
    %cst_67 = arith.constant dense<0.000000e+00> : vector<8x8xf32>
    %231 = vector.multi_reduction <add>, %230, %cst_67 [2] : vector<8x8x8xf32> to vector<8x8xf32>
    %232 = vector.shape_cast %231 : vector<8x8xf32> to vector<8x8x1xf32>
    %233 = tpu.reciprocal %232 {approx = true} : vector<8x8x1xf32> -> vector<8x8x1xf32>
    %234 = vector.broadcast %233 : vector<8x8x1xf32> to vector<8x8x8xf32>
    %235 = arith.mulf %230, %234 : vector<8x8x8xf32>
    "tpu.trace_start"() <{level = 10 : i32, message = "bqk,bkd->bqd"}> : () -> ()
    %cst_68 = arith.constant dense<0.000000e+00> : vector<8x8x8xf32>
    %236 = tpu.matmul %235, %224, %cst_68 {dimension_numbers = #tpu.dot_dimension_numbers<[2], [1], [1], [2], [0, 0, 0, 1, 1, 2], [0], [0]>} : vector<8x8x8xf32>, vector<8x8x8xf32>, vector<8x8x8xf32> -> vector<8x8x8xf32>
    "tpu.trace_stop"() : () -> ()
    %237 = vector.extract_strided_slice %236 {offsets = [0, 0, 0], sizes = [2, 8, 8], strides = [1, 1, 1]} : vector<8x8x8xf32> to vector<2x8x8xf32>
    %238 = vector.shape_cast %237 : vector<2x8x8xf32> to vector<16x8xf32>
    %239 = vector.extract_strided_slice %236 {offsets = [2, 0, 0], sizes = [2, 8, 8], strides = [1, 1, 1]} : vector<8x8x8xf32> to vector<2x8x8xf32>
    %240 = vector.shape_cast %239 : vector<2x8x8xf32> to vector<16x8xf32>
    %241 = vector.extract_strided_slice %236 {offsets = [4, 0, 0], sizes = [2, 8, 8], strides = [1, 1, 1]} : vector<8x8x8xf32> to vector<2x8x8xf32>
    %242 = vector.shape_cast %241 : vector<2x8x8xf32> to vector<16x8xf32>
    %243 = vector.extract_strided_slice %236 {offsets = [6, 0, 0], sizes = [2, 8, 8], strides = [1, 1, 1]} : vector<8x8x8xf32> to vector<2x8x8xf32>
    %244 = vector.shape_cast %243 : vector<2x8x8xf32> to vector<16x8xf32>
    %245 = tpu.concatenate %238, %240, %242, %244 in 1 : vector<16x8xf32>, vector<16x8xf32>, vector<16x8xf32>, vector<16x8xf32> -> vector<16x32xf32>
    %246 = arith.truncf %245 : vector<16x32xf32> to vector<16x32xbf16>
    %c1_69 = arith.constant 1 : index
    %c0_70 = arith.constant 0 : index
    %c0_71 = arith.constant 0 : index
    %247 = vector.load %arg4[%c1_69, %c0_70, %c0_71] : memref<2x32x32xbf16, #tpu.memory_space<vmem>>, vector<1x32x32xbf16>
    %248 = vector.shape_cast %247 : vector<1x32x32xbf16> to vector<32x32xbf16>
    %cst_72 = arith.constant dense<0.000000e+00> : vector<16x32xf32>
    %249 = tpu.matmul %246, %248, %cst_72 {dimension_numbers = #tpu.dot_dimension_numbers<[1], [0], [0], [1], [0, 0, 1, 1], [], []>} : vector<16x32xbf16>, vector<32x32xbf16>, vector<16x32xf32> -> vector<16x32xf32>
    %250 = vector.broadcast %184 : vector<1x32xf32> to vector<16x32xf32>
    %251 = arith.addf %249, %250 : vector<16x32xf32>
    %252 = arith.addf %181, %251 : vector<16x32xf32>
    %cst_73 = arith.constant dense<0.000000e+00> : vector<16xf32>
    %253 = vector.multi_reduction <add>, %252, %cst_73 [1] : vector<16x32xf32> to vector<16xf32>
    %254 = vector.shape_cast %253 : vector<16xf32> to vector<16x1xf32>
    %cst_74 = arith.constant 3.200000e+01 : f32
    %255 = vector.broadcast %cst_74 : f32 to vector<16x1xf32>
    %256 = arith.divf %254, %255 : vector<16x1xf32>
    %257 = vector.broadcast %256 : vector<16x1xf32> to vector<16x32xf32>
    %258 = arith.subf %252, %257 : vector<16x32xf32>
    %259 = arith.mulf %258, %258 : vector<16x32xf32>
    %cst_75 = arith.constant dense<0.000000e+00> : vector<16xf32>
    %260 = vector.multi_reduction <add>, %259, %cst_75 [1] : vector<16x32xf32> to vector<16xf32>
    %261 = vector.shape_cast %260 : vector<16xf32> to vector<16x1xf32>
    %cst_76 = arith.constant 3.200000e+01 : f32
    %262 = vector.broadcast %cst_76 : f32 to vector<16x1xf32>
    %263 = arith.divf %261, %262 : vector<16x1xf32>
    %264 = vector.broadcast %256 : vector<16x1xf32> to vector<16x32xf32>
    %265 = arith.subf %252, %264 : vector<16x32xf32>
    %cst_77 = arith.constant 9.99999996E-13 : f32
    %266 = vector.broadcast %cst_77 : f32 to vector<16x1xf32>
    %267 = arith.addf %263, %266 : vector<16x1xf32>
    %268 = math.rsqrt %267 : vector<16x1xf32>
    %269 = vector.broadcast %268 : vector<16x1xf32> to vector<16x32xf32>
    %270 = arith.mulf %265, %269 : vector<16x32xf32>
    %271 = vector.broadcast %186 : vector<1x32xf32> to vector<16x32xf32>
    %272 = arith.mulf %270, %271 : vector<16x32xf32>
    %273 = vector.broadcast %187 : vector<1x32xf32> to vector<16x32xf32>
    %274 = arith.addf %272, %273 : vector<16x32xf32>
    %275 = arith.truncf %274 : vector<16x32xf32> to vector<16x32xbf16>
    %c1_78 = arith.constant 1 : index
    %c0_79 = arith.constant 0 : index
    %c0_80 = arith.constant 0 : index
    %276 = vector.load %arg5[%c1_78, %c0_79, %c0_80] : memref<2x32x128xbf16, #tpu.memory_space<vmem>>, vector<1x32x128xbf16>
    %277 = vector.shape_cast %276 : vector<1x32x128xbf16> to vector<32x128xbf16>
    %cst_81 = arith.constant dense<0.000000e+00> : vector<16x128xf32>
    %278 = tpu.matmul %275, %277, %cst_81 {dimension_numbers = #tpu.dot_dimension_numbers<[1], [0], [0], [1], [0, 0, 1, 1], [], []>} : vector<16x32xbf16>, vector<32x128xbf16>, vector<16x128xf32> -> vector<16x128xf32>
    %c1_82 = arith.constant 1 : index
    %c0_83 = arith.constant 0 : index
    %c0_84 = arith.constant 0 : index
    %279 = vector.load %arg6[%c1_82, %c0_83, %c0_84] : memref<2x1x128xf32, #tpu.memory_space<vmem>>, vector<1x1x128xf32>
    %280 = vector.shape_cast %279 : vector<1x1x128xf32> to vector<1x128xf32>
    %281 = vector.broadcast %280 : vector<1x128xf32> to vector<16x128xf32>
    %282 = arith.addf %278, %281 : vector<16x128xf32>
    %283 = arith.mulf %282, %282 : vector<16x128xf32>
    %284 = arith.mulf %282, %283 : vector<16x128xf32>
    %cst_85 = arith.constant 4.471500e-02 : f32
    %285 = vector.broadcast %cst_85 : f32 to vector<16x128xf32>
    %286 = arith.mulf %285, %284 : vector<16x128xf32>
    %287 = arith.addf %282, %286 : vector<16x128xf32>
    %cst_86 = arith.constant 0.797884583 : f32
    %288 = vector.broadcast %cst_86 : f32 to vector<16x128xf32>
    %289 = arith.mulf %288, %287 : vector<16x128xf32>
    %290 = math.tanh %289 : vector<16x128xf32>
    %cst_87 = arith.constant 1.000000e+00 : f32
    %291 = vector.broadcast %cst_87 : f32 to vector<16x128xf32>
    %292 = arith.addf %291, %290 : vector<16x128xf32>
    %cst_88 = arith.constant 5.000000e-01 : f32
    %293 = vector.broadcast %cst_88 : f32 to vector<16x128xf32>
    %294 = arith.mulf %293, %292 : vector<16x128xf32>
    %295 = arith.mulf %282, %294 : vector<16x128xf32>
    %296 = arith.truncf %295 : vector<16x128xf32> to vector<16x128xbf16>
    %c1_89 = arith.constant 1 : index
    %c0_90 = arith.constant 0 : index
    %c0_91 = arith.constant 0 : index
    %297 = vector.load %arg7[%c1_89, %c0_90, %c0_91] : memref<2x128x32xbf16, #tpu.memory_space<vmem>>, vector<1x128x32xbf16>
    %298 = vector.shape_cast %297 : vector<1x128x32xbf16> to vector<128x32xbf16>
    %cst_92 = arith.constant dense<0.000000e+00> : vector<16x32xf32>
    %299 = tpu.matmul %296, %298, %cst_92 {dimension_numbers = #tpu.dot_dimension_numbers<[1], [0], [0], [1], [0, 0, 1, 1], [], []>} : vector<16x128xbf16>, vector<128x32xbf16>, vector<16x32xf32> -> vector<16x32xf32>
    %300 = vector.broadcast %185 : vector<1x32xf32> to vector<16x32xf32>
    %301 = arith.addf %299, %300 : vector<16x32xf32>
    %302 = arith.addf %274, %301 : vector<16x32xf32>
    %cst_93 = arith.constant dense<0.000000e+00> : vector<16xf32>
    %303 = vector.multi_reduction <add>, %302, %cst_93 [1] : vector<16x32xf32> to vector<16xf32>
    %304 = vector.shape_cast %303 : vector<16xf32> to vector<16x1xf32>
    %cst_94 = arith.constant 3.200000e+01 : f32
    %305 = vector.broadcast %cst_94 : f32 to vector<16x1xf32>
    %306 = arith.divf %304, %305 : vector<16x1xf32>
    %307 = vector.broadcast %306 : vector<16x1xf32> to vector<16x32xf32>
    %308 = arith.subf %302, %307 : vector<16x32xf32>
    %309 = arith.mulf %308, %308 : vector<16x32xf32>
    %cst_95 = arith.constant dense<0.000000e+00> : vector<16xf32>
    %310 = vector.multi_reduction <add>, %309, %cst_95 [1] : vector<16x32xf32> to vector<16xf32>
    %311 = vector.shape_cast %310 : vector<16xf32> to vector<16x1xf32>
    %cst_96 = arith.constant 3.200000e+01 : f32
    %312 = vector.broadcast %cst_96 : f32 to vector<16x1xf32>
    %313 = arith.divf %311, %312 : vector<16x1xf32>
    %314 = vector.broadcast %306 : vector<16x1xf32> to vector<16x32xf32>
    %315 = arith.subf %302, %314 : vector<16x32xf32>
    %cst_97 = arith.constant 9.99999996E-13 : f32
    %316 = vector.broadcast %cst_97 : f32 to vector<16x1xf32>
    %317 = arith.addf %313, %316 : vector<16x1xf32>
    %318 = math.rsqrt %317 : vector<16x1xf32>
    %319 = vector.broadcast %318 : vector<16x1xf32> to vector<16x32xf32>
    %320 = arith.mulf %315, %319 : vector<16x32xf32>
    %321 = vector.broadcast %188 : vector<1x32xf32> to vector<16x32xf32>
    %322 = arith.mulf %320, %321 : vector<16x32xf32>
    %323 = vector.broadcast %189 : vector<1x32xf32> to vector<16x32xf32>
    %324 = arith.addf %322, %323 : vector<16x32xf32>
    %325 = vector.shape_cast %324 : vector<16x32xf32> to vector<2x8x32xf32>
    %326 = vector.extract_strided_slice %325 {offsets = [0, 0, 0], sizes = [2, 1, 32], strides = [1, 1, 1]} : vector<2x8x32xf32> to vector<2x1x32xf32>
    %327 = vector.shape_cast %326 : vector<2x1x32xf32> to vector<2x32xf32>
    %328 = arith.truncf %327 : vector<2x32xf32> to vector<2x32xbf16>
    %c0_98 = arith.constant 0 : index
    %c0_99 = arith.constant 0 : index
    %329 = vector.load %arg9[%c0_98, %c0_99] : memref<32x32xbf16, #tpu.memory_space<vmem>>, vector<32x32xbf16>
    %cst_100 = arith.constant dense<0.000000e+00> : vector<2x32xf32>
    %330 = tpu.matmul %328, %329, %cst_100 {dimension_numbers = #tpu.dot_dimension_numbers<[1], [0], [0], [1], [0, 0, 1, 1], [], []>} : vector<2x32xbf16>, vector<32x32xbf16>, vector<2x32xf32> -> vector<2x32xf32>
    %331 = vector.broadcast %5 : vector<1x32xf32> to vector<2x32xf32>
    %332 = arith.addf %330, %331 : vector<2x32xf32>
    %333 = math.tanh %332 : vector<2x32xf32>
    %c0_101 = arith.constant 0 : index
    %c0_102 = arith.constant 0 : index
    %334 = vector.load %arg10[%c0_101, %c0_102] : memref<2x32xf32, #tpu.memory_space<vmem>>, vector<2x32xf32>
    tpu.vector_store %arg10[%c0_101, %c0_102], %333 {strides = array<i32>} : memref<2x32xf32, #tpu.memory_space<vmem>>, vector<2x32xf32>,
    return
  }
}

</mosaic_0001>

<llo_original>
// kernel: zero_tc_forward.1
$region0: #{zero_tc_forward.1}
  #allocation0 [shape = 'u32[]', space=smem, size = 0x4, offset = 0x4, fixed_abs, tag = 'smem constant byte address 0x4 - core index']
  #allocation1 [shape = 'u32[72,128]{1,0:T(1,128)}', space=vmem, size = 0x9000, scoped, tag = 'internal scratch']
  %s0 = inlined_call_operand.vmem [shape: s32[16,1], index: 0, kind: input, shape index: {}]
  %s1 = inlined_call_operand.vmem [shape: f32[141,32], index: 1, kind: input, shape index: {}]
  %s2 = inlined_call_operand.vmem [shape: bf16[2,32,96], index: 2, kind: input, shape index: {}]
  %s3 = inlined_call_operand.vmem [shape: f32[2,1,96], index: 3, kind: input, shape index: {}]
  %s4 = inlined_call_operand.vmem [shape: bf16[2,32,32], index: 4, kind: input, shape index: {}]
  %s5 = inlined_call_operand.vmem [shape: bf16[2,32,128], index: 5, kind: input, shape index: {}]
  %s6 = inlined_call_operand.vmem [shape: f32[2,1,128], index: 6, kind: input, shape index: {}]
  %s7 = inlined_call_operand.vmem [shape: bf16[2,128,32], index: 7, kind: input, shape index: {}]
  %s8 = inlined_call_operand.vmem [shape: f32[2,6,32], index: 8, kind: input, shape index: {}]
  %s9 = inlined_call_operand.vmem [shape: bf16[32,32], index: 9, kind: input, shape index: {}]
  %s10 = inlined_call_operand.hbm [shape: f32[2,32], index: 10, kind: output, shape index: {}]
  %s11 = sld [smem:[#allocation0]]
  $region50: #{zero_tc_forward.1} parent=0
    _
  %s13 = ssub.s32 1, %s11
  %s14 = scalar_select 0, %s13, %s11
  $region1: #{zero_tc_forward.1} parent=0
    #allocation2 [shape = 'u8[1024]{0}', space=vmem, size = 0x400, scoped, tag = 'output window, operand 0, single buffered']
    #allocation3 [shape = 's32[1]{0}', space=sflag, size = 0x4, scoped, tag = 'scoped memory for zero_tc_forward.1']
    %15 = vsyncpa [#allocation3], 0
    // Predicated region
    $region2: #{zero_tc_forward.1} parent=1 // pred_check
      _
    $region3: #{zero_tc_forward.1} parent=1 // pred_check_branch
      %17 = sbr.rel (0) target = $region5
    $region4: #{zero_tc_forward.1} parent=1 // pred_region
      _
    $region5: #{zero_tc_forward.1} parent=1 // pred_fallthru
      _
    // Predicated region
    $region6: #{zero_tc_forward.1} parent=1 // pred_check
      _
    $region7: #{zero_tc_forward.1} parent=1 // pred_check_branch
      %19 = sbr.rel (0) target = $region9
    $region8: #{zero_tc_forward.1} parent=1 // pred_region
      _
    $region9: #{zero_tc_forward.1} parent=1 // pred_fallthru
      _
    // Predicated region
    $region10: #{zero_tc_forward.1} parent=1 // pred_check
      _
    $region11: #{zero_tc_forward.1} parent=1 // pred_check_branch
      %21 = sbr.rel (0) target = $region13
    $region12: #{zero_tc_forward.1} parent=1 // pred_region
      _
    $region13: #{zero_tc_forward.1} parent=1 // pred_fallthru
      _
    // Predicated region
    $region14: #{zero_tc_forward.1} parent=1 // pred_check
      _
    $region15: #{zero_tc_forward.1} parent=1 // pred_check_branch
      %23 = sbr.rel (0) target = $region17
    $region16: #{zero_tc_forward.1} parent=1 // pred_region
      _
    $region17: #{zero_tc_forward.1} parent=1 // pred_fallthru
      _
    // Predicated region
    $region18: #{zero_tc_forward.1} parent=1 // pred_check
      _
    $region19: #{zero_tc_forward.1} parent=1 // pred_check_branch
      %25 = sbr.rel (0) target = $region21
    $region20: #{zero_tc_forward.1} parent=1 // pred_region
      _
    $region21: #{zero_tc_forward.1} parent=1 // pred_fallthru
      _
    // Predicated region
    $region22: #{zero_tc_forward.1} parent=1 // pred_check
      _
    $region23: #{zero_tc_forward.1} parent=1 // pred_check_branch
      %27 = sbr.rel (0) target = $region25
    $region24: #{zero_tc_forward.1} parent=1 // pred_region
      _
    $region25: #{zero_tc_forward.1} parent=1 // pred_fallthru
      _
    // Predicated region
    $region26: #{zero_tc_forward.1} parent=1 // pred_check
      _
    $region27: #{zero_tc_forward.1} parent=1 // pred_check_branch
      %29 = sbr.rel (0) target = $region29
    $region28: #{zero_tc_forward.1} parent=1 // pred_region
      _
    $region29: #{zero_tc_forward.1} parent=1 // pred_fallthru
      _
    // Predicated region
    $region30: #{zero_tc_forward.1} parent=1 // pred_check
      _
    $region31: #{zero_tc_forward.1} parent=1 // pred_check_branch
      %31 = sbr.rel (0) target = $region33
    $region32: #{zero_tc_forward.1} parent=1 // pred_region
      _
    $region33: #{zero_tc_forward.1} parent=1 // pred_fallthru
      _
    // Predicated region
    $region34: #{zero_tc_forward.1} parent=1 // pred_check
      _
    $region35: #{zero_tc_forward.1} parent=1 // pred_check_branch
      %33 = sbr.rel (0) target = $region37
    $region36: #{zero_tc_forward.1} parent=1 // pred_region
      _
    $region37: #{zero_tc_forward.1} parent=1 // pred_fallthru
      _
    // Predicated region
    $region38: #{zero_tc_forward.1} parent=1 // pred_check
      _
    $region39: #{zero_tc_forward.1} parent=1 // pred_check_branch
      %35 = sbr.rel (0) target = $region41
    $region40: #{zero_tc_forward.1} parent=1 // pred_region
      _
    $region41: #{zero_tc_forward.1} parent=1 // pred_fallthru
      _
    %v37 = vld [vmem:[%s1] sm:$0xff]
    %v38 = vld [vmem:[%s1 + $0x8] sm:$0xff]
    %v39 = vld [vmem:[%s1 + $0x10] sm:$0xff]
    %v40 = vld [vmem:[%s1 + $0x18] sm:$0xff]
    %v41 = vld [vmem:[%s1 + $0x20] sm:$0xff]
    %v42 = vld [vmem:[%s1 + $0x28] sm:$0xff]
    %v43 = vld [vmem:[%s1 + $0x30] sm:$0xff]
    %v44 = vld [vmem:[%s1 + $0x38] sm:$0xff]
    %v45 = vld [vmem:[%s1 + $0x40] sm:$0xff]
    %v46 = vld [vmem:[%s1 + $0x48] sm:$0xff]
    %v47 = vld [vmem:[%s1 + $0x50] sm:$0xff]
    %v48 = vld [vmem:[%s1 + $0x58] sm:$0xff]
    %v49 = vld [vmem:[%s1 + $0x60] sm:$0xff]
    %v50 = vld [vmem:[%s1 + $0x68] sm:$0xff]
    %v51 = vld [vmem:[%s1 + $0x70] sm:$0xff]
    %v52 = vld [vmem:[%s1 + $0x78] sm:$0xff]
    %v53 = vld [vmem:[%s1 + $0x80] sm:$0xff]
    %v54 = vld [vmem:[%s1 + $0x88] sm:$0x1]
    %v55 = vld [vmem:[%s1 + $0x8a] sm:$0x1]
    %v56 = vld [vmem:[%s1 + $0x8b] sm:$0x1]
    %v57 = vld [vmem:[%s1 + $0x8c] sm:$0x1]
    %v58 = vld [vmem:[%s0] sm:$0xff]
    %v59 = vld [vmem:[%s0 + $0x8] sm:$0xff]
    %v60 = vlaneseq
    %v61 = vand.u32 %v60, 127
    %62 = vset.pattern.permute.xlu0 0
    %63 = vperm.xlu0 %62, %v58
    %v64 = vpop.permute.xlu0 %63
    %65 = vset.pattern.permute.xlu0 0
    %66 = vperm.xlu0 %65, %v59
    %v67 = vpop.permute.xlu0 %66
    %vm68 = vcmp.eq.s32.totalorder %v64, %v61
    %vm69 = vcmp.eq.s32.totalorder %v67, %v61
    %v70 = vsel %vm68, 1, 0
    %v71 = vsel %vm69, 1, 0
    %v72 = vcvt.s32.f32 %v70
    %v73 = vcvt.s32.f32 %v71
    %74 = vmatpush.msra.mxu0 %v52
    %75 = vmatpush.msra.mxu0 %v51
    %76 = vmatpush.msra.mxu0 %v50
    %77 = vmatpush.msra.mxu0 %v49
    %78 = vmatpush.msra.mxu0 %v48
    %79 = vmatpush.msra.mxu0 %v47
    %80 = vmatpush.msra.mxu0 %v46
    %81 = vmatpush.msra.mxu0 %v45
    %82 = vmatpush.msra.mxu0 %v44
    %83 = vmatpush.msra.mxu0 %v43
    %84 = vmatpush.msra.mxu0 %v42
    %85 = vmatpush.msra.mxu0 %v41
    %86 = vmatpush.msra.mxu0 %v40
    %87 = vmatpush.msra.mxu0 %v39
    %88 = vmatpush.msra.mxu0 %v38
    %89 = vmatpush.msra.mxu0 %v37
    %90 = vmatmul.f32.gmra.mxu0 %v72
    %v91 = vpop.f32.mrf.mxu0
    %v92 = vadd.f32 %v53, %v91
    %93 = vmatmul.f32.gmra.mxu0 %v73
    %v94 = vpop.f32.mrf.mxu0
    %v95 = vadd.f32 %v53, %v94
    %96 = vdwg.mxu0
    %v97 = vperm.slane %v54, 0
    %v98 = vadd.f32 %v92, %v97
    %v99 = vadd.f32 %v95, %v97
    %vm100 = vcmask 261120
    %v101 = vsel %vm100, %v98, 0.0
    %102 = vadd.xlane.f32.xlu0 %v101
    %v103 = vpop.xlane.xlu0 %102
    %v104 = vsel %vm100, %v99, 0.0
    %105 = vadd.xlane.f32.xlu0 %v104
    %v106 = vpop.xlane.xlu0 %105
    %v107 = vrcp.pop 32.0
    %v108 = vmul.f32 32.0, %v107
    %v109 = vsub.f32 1.0, %v108
    %v110 = vmul.f32 %v107, %v109
    %v111 = vadd.f32 %v107, %v110
    %vm112 = vweird.f32 %v107
    %v113 = vsel %vm112, %v107, %v111
    %v114 = vmul.f32 %v103, %v113
    %v115 = vmul.f32 %v106, %v113
    %v116 = vsub.f32 %v98, %v114
    %v117 = vsub.f32 %v99, %v115
    %v118 = vmul.f32 %v116, %v116
    %v119 = vmul.f32 %v117, %v117
    %v120 = vsel %vm100, %v118, 0.0
    %121 = vadd.xlane.f32.xlu0 %v120
    %v122 = vpop.xlane.xlu0 %121
    %v123 = vsel %vm100, %v119, 0.0
    %124 = vadd.xlane.f32.xlu0 %v123
    %v125 = vpop.xlane.xlu0 %124
    %v126 = vmul.f32 %v122, %v113
    %v127 = vmul.f32 %v125, %v113
    %v128 = vadd.f32 %v126, 1e-12
    %v129 = vadd.f32 %v127, 1e-12
    %v130 = vrsqrt.pop %v128
    %v131 = vmul.f32 %v130, %v128
    %v132 = vmul.f32 %v131, %v130
    %v133 = vmul.f32 0.5, %v132
    %v134 = vsub.f32 1.5, %v133
    %v135 = vmul.f32 %v130, %v134
    %vm136 = vweird.f32 %v128
    %vm137 = vweird.f32 %v130
    %vm138 = vmor %vm136, %vm137
    %v139 = vsel %vm138, %v130, %v135
    %v140 = vrsqrt.pop %v129
    %v141 = vmul.f32 %v140, %v129
    %v142 = vmul.f32 %v141, %v140
    %v143 = vmul.f32 0.5, %v142
    %v144 = vsub.f32 1.5, %v143
    %v145 = vmul.f32 %v140, %v144
    %vm146 = vweird.f32 %v129
    %vm147 = vweird.f32 %v140
    %vm148 = vmor %vm146, %vm147
    %v149 = vsel %vm148, %v140, %v145
    %v150 = vmul.f32 %v116, %v139
    %v151 = vmul.f32 %v117, %v149
    %v152 = vperm.slane %v55, 0
    %v153 = vmul.f32 %v150, %v152
    %v154 = vmul.f32 %v151, %v152
    %v155 = vperm.slane %v56, 0
    %v156 = vadd.f32 %v153, %v155
    %v157 = vadd.f32 %v154, %v155
    %v158 = vld [vmem:[%s8] sm:$0x3f]
    %v159 = vpack.c.bf16 %v157, %v156
    %v160 = vld [vmem:[%s2] sm:$0xf]
    %v161 = vld [vmem:[%s2 + $0x4] sm:$0xf]
    %v162 = vld [vmem:[%s2 + $0x8] sm:$0xf]
    %v163 = vld [vmem:[%s2 + $0xc] sm:$0xf]
    %v164 = vld [vmem:[%s3] sm:$0x1]
    %v166 = vperm.slane %v164, 0
    %v172 = vunpack.c.l.b16 %v160
    %v173 = vunpack.c.l.b16 %v161
    %v174 = vunpack.c.l.b16 %v162
    %v175 = vunpack.c.l.b16 %v163
    %v176 = vpack.c.b16 %v173, %v172
    %v177 = vpack.c.b16 %v175, %v174
    %v181 = vsel %vm100, %v159, 0
    %183 = vmatpush.bf16.msra.mxu0 0
    %184 = vmatpush.bf16.msra.mxu0 0
    %185 = vmatpush.bf16.msra.mxu0 0
    %186 = vmatpush.bf16.msra.mxu0 0
    %187 = vmatpush.bf16.msra.mxu0 0
    %188 = vmatpush.bf16.msra.mxu0 0
    %189 = vmatpush.bf16.msra.mxu0 %v177
    %190 = vmatpush.bf16.msra.mxu0 %v176
    %191 = vmatmul.bf16.gmra.mxu0 %v181
    %v192 = vpop.f32.mrf.mxu0
    %v193 = vadd.f32 %v166, %v192
    %v194 = vpop.f32.mrf.mxu0
    %v195 = vadd.f32 %v166, %v194
    %196 = vdwg.mxu0
    %199 = vrot.lane.b32.xlu0 %v193, 120
    %v200 = vpop.permute.xlu0 %199
    %201 = vrot.lane.b32.xlu0 %v195, 120
    %v202 = vpop.permute.xlu0 %201
    %203 = vrot.lane.b32.xlu0 %v193, 112
    %v204 = vpop.permute.xlu0 %203
    %205 = vrot.lane.b32.xlu0 %v195, 112
    %v206 = vpop.permute.xlu0 %205
    %207 = vrot.lane.b32.xlu0 %v193, 104
    %v208 = vpop.permute.xlu0 %207
    %209 = vrot.lane.b32.xlu0 %v195, 104
    %v210 = vpop.permute.xlu0 %209
    %211 = vrot.lane.b32.xlu0 %v193, 96
    %v212 = vpop.permute.xlu0 %211
    %vm213 = vcmask 64512
    %v214 = vsel %vm213, %v193, 0
    %v216 = vsel %vm213, %v212, 0
    %218 = vmatpush.xpose.msra.mxu0 0.0
    %219 = vmatpush.xpose.msra.mxu0 0.0
    %220 = vmatpush.xpose.msra.mxu0 0.0
    %221 = vmatpush.xpose.msra.mxu0 0.0
    %222 = vmatpush.xpose.msra.mxu0 0.0
    %223 = vmatpush.xpose.msra.mxu0 0.0
    %224 = vmatpush.xpose.msra.mxu0 0.0
    %225 = vmatpush.xpose.msra.mxu0 0.0
    %226 = vmatpush.xpose.msra.mxu0 0.0
    %227 = vmatpush.xpose.msra.mxu0 0.0
    %228 = vmatpush.xpose.msra.mxu0 0.0
    %229 = vmatpush.xpose.msra.mxu0 0.0
    %230 = vmatpush.xpose.msra.mxu0 0.0
    %231 = vmatpush.xpose.msra.mxu0 0.0
    %232 = vmatpush.xpose.msra.mxu0 0.0
    %233 = vmatpush.xpose.msra.mxu0 %v216
    %234 = vmatmul.f32.gmra.mxu0 %v214
    %v235 = vpop.f32.mrf.mxu0
    %v236 = vadd.f32 0.0, %v235
    %237 = vdwg.mxu0
    %238 = vrot.lane.b32.xlu0 %v195, 96
    %v239 = vpop.permute.xlu0 %238
    %v240 = vsel %vm213, %v195, 0
    %v242 = vsel %vm213, %v239, 0
    %244 = vmatpush.xpose.msra.mxu0 0.0
    %245 = vmatpush.xpose.msra.mxu0 0.0
    %246 = vmatpush.xpose.msra.mxu0 0.0
    %247 = vmatpush.xpose.msra.mxu0 0.0
    %248 = vmatpush.xpose.msra.mxu0 0.0
    %249 = vmatpush.xpose.msra.mxu0 0.0
    %250 = vmatpush.xpose.msra.mxu0 0.0
    %251 = vmatpush.xpose.msra.mxu0 0.0
    %252 = vmatpush.xpose.msra.mxu0 0.0
    %253 = vmatpush.xpose.msra.mxu0 0.0
    %254 = vmatpush.xpose.msra.mxu0 0.0
    %255 = vmatpush.xpose.msra.mxu0 0.0
    %256 = vmatpush.xpose.msra.mxu0 0.0
    %257 = vmatpush.xpose.msra.mxu0 0.0
    %258 = vmatpush.xpose.msra.mxu0 0.0
    %259 = vmatpush.xpose.msra.mxu0 %v242
    %260 = vmatmul.f32.gmra.mxu0 %v240
    %v261 = vpop.f32.mrf.mxu0
    %v262 = vadd.f32 0.0, %v261
    %263 = vdwg.mxu0
    %264 = vrot.lane.b32.xlu0 %v200, 96
    %v265 = vpop.permute.xlu0 %264
    %v266 = vsel %vm213, %v200, 0
    %v268 = vsel %vm213, %v265, 0
    %270 = vmatpush.xpose.msra.mxu0 0.0
    %271 = vmatpush.xpose.msra.mxu0 0.0
    %272 = vmatpush.xpose.msra.mxu0 0.0
    %273 = vmatpush.xpose.msra.mxu0 0.0
    %274 = vmatpush.xpose.msra.mxu0 0.0
    %275 = vmatpush.xpose.msra.mxu0 0.0
    %276 = vmatpush.xpose.msra.mxu0 0.0
    %277 = vmatpush.xpose.msra.mxu0 0.0
    %278 = vmatpush.xpose.msra.mxu0 0.0
    %279 = vmatpush.xpose.msra.mxu0 0.0
    %280 = vmatpush.xpose.msra.mxu0 0.0
    %281 = vmatpush.xpose.msra.mxu0 0.0
    %282 = vmatpush.xpose.msra.mxu0 0.0
    %283 = vmatpush.xpose.msra.mxu0 0.0
    %284 = vmatpush.xpose.msra.mxu0 0.0
    %285 = vmatpush.xpose.msra.mxu0 %v268
    %286 = vmatmul.f32.gmra.mxu0 %v266
    %v287 = vpop.f32.mrf.mxu0
    %v288 = vadd.f32 0.0, %v287
    %289 = vdwg.mxu0
    %290 = vrot.lane.b32.xlu0 %v202, 96
    %v291 = vpop.permute.xlu0 %290
    %v292 = vsel %vm213, %v202, 0
    %v294 = vsel %vm213, %v291, 0
    %296 = vmatpush.xpose.msra.mxu0 0.0
    %297 = vmatpush.xpose.msra.mxu0 0.0
    %298 = vmatpush.xpose.msra.mxu0 0.0
    %299 = vmatpush.xpose.msra.mxu0 0.0
    %300 = vmatpush.xpose.msra.mxu0 0.0
    %301 = vmatpush.xpose.msra.mxu0 0.0
    %302 = vmatpush.xpose.msra.mxu0 0.0
    %303 = vmatpush.xpose.msra.mxu0 0.0
    %304 = vmatpush.xpose.msra.mxu0 0.0
    %305 = vmatpush.xpose.msra.mxu0 0.0
    %306 = vmatpush.xpose.msra.mxu0 0.0
    %307 = vmatpush.xpose.msra.mxu0 0.0
    %308 = vmatpush.xpose.msra.mxu0 0.0
    %309 = vmatpush.xpose.msra.mxu0 0.0
    %310 = vmatpush.xpose.msra.mxu0 0.0
    %311 = vmatpush.xpose.msra.mxu0 %v294
    %312 = vmatmul.f32.gmra.mxu0 %v292
    %v313 = vpop.f32.mrf.mxu0
    %v314 = vadd.f32 0.0, %v313
    %315 = vdwg.mxu0
    %316 = vrot.lane.b32.xlu0 %v204, 96
    %v317 = vpop.permute.xlu0 %316
    %v318 = vsel %vm213, %v204, 0
    %v320 = vsel %vm213, %v317, 0
    %322 = vmatpush.xpose.msra.mxu0 0.0
    %323 = vmatpush.xpose.msra.mxu0 0.0
    %324 = vmatpush.xpose.msra.mxu0 0.0
    %325 = vmatpush.xpose.msra.mxu0 0.0
    %326 = vmatpush.xpose.msra.mxu0 0.0
    %327 = vmatpush.xpose.msra.mxu0 0.0
    %328 = vmatpush.xpose.msra.mxu0 0.0
    %329 = vmatpush.xpose.msra.mxu0 0.0
    %330 = vmatpush.xpose.msra.mxu0 0.0
    %331 = vmatpush.xpose.msra.mxu0 0.0
    %332 = vmatpush.xpose.msra.mxu0 0.0
    %333 = vmatpush.xpose.msra.mxu0 0.0
    %334 = vmatpush.xpose.msra.mxu0 0.0
    %335 = vmatpush.xpose.msra.mxu0 0.0
    %336 = vmatpush.xpose.msra.mxu0 0.0
    %337 = vmatpush.xpose.msra.mxu0 %v320
    %338 = vmatmul.f32.gmra.mxu0 %v318
    %v339 = vpop.f32.mrf.mxu0
    %v340 = vadd.f32 0.0, %v339
    %341 = vdwg.mxu0
    %342 = vrot.lane.b32.xlu0 %v206, 96
    %v343 = vpop.permute.xlu0 %342
    %v344 = vsel %vm213, %v206, 0
    %v346 = vsel %vm213, %v343, 0
    %348 = vmatpush.xpose.msra.mxu0 0.0
    %349 = vmatpush.xpose.msra.mxu0 0.0
    %350 = vmatpush.xpose.msra.mxu0 0.0
    %351 = vmatpush.xpose.msra.mxu0 0.0
    %352 = vmatpush.xpose.msra.mxu0 0.0
    %353 = vmatpush.xpose.msra.mxu0 0.0
    %354 = vmatpush.xpose.msra.mxu0 0.0
    %355 = vmatpush.xpose.msra.mxu0 0.0
    %356 = vmatpush.xpose.msra.mxu0 0.0
    %357 = vmatpush.xpose.msra.mxu0 0.0
    %358 = vmatpush.xpose.msra.mxu0 0.0
    %359 = vmatpush.xpose.msra.mxu0 0.0
    %360 = vmatpush.xpose.msra.mxu0 0.0
    %361 = vmatpush.xpose.msra.mxu0 0.0
    %362 = vmatpush.xpose.msra.mxu0 0.0
    %363 = vmatpush.xpose.msra.mxu0 %v346
    %364 = vmatmul.f32.gmra.mxu0 %v344
    %v365 = vpop.f32.mrf.mxu0
    %v366 = vadd.f32 0.0, %v365
    %367 = vdwg.mxu0
    %368 = vrot.lane.b32.xlu0 %v208, 96
    %v369 = vpop.permute.xlu0 %368
    %v370 = vsel %vm213, %v208, 0
    %v372 = vsel %vm213, %v369, 0
    %374 = vmatpush.xpose.msra.mxu0 0.0
    %375 = vmatpush.xpose.msra.mxu0 0.0
    %376 = vmatpush.xpose.msra.mxu0 0.0
    %377 = vmatpush.xpose.msra.mxu0 0.0
    %378 = vmatpush.xpose.msra.mxu0 0.0
    %379 = vmatpush.xpose.msra.mxu0 0.0
    %380 = vmatpush.xpose.msra.mxu0 0.0
    %381 = vmatpush.xpose.msra.mxu0 0.0
    %382 = vmatpush.xpose.msra.mxu0 0.0
    %383 = vmatpush.xpose.msra.mxu0 0.0
    %384 = vmatpush.xpose.msra.mxu0 0.0
    %385 = vmatpush.xpose.msra.mxu0 0.0
    %386 = vmatpush.xpose.msra.mxu0 0.0
    %387 = vmatpush.xpose.msra.mxu0 0.0
    %388 = vmatpush.xpose.msra.mxu0 0.0
    %389 = vmatpush.xpose.msra.mxu0 %v372
    %390 = vmatmul.f32.gmra.mxu0 %v370
    %v391 = vpop.f32.mrf.mxu0
    %v392 = vadd.f32 0.0, %v391
    %393 = vdwg.mxu0
    %394 = vrot.lane.b32.xlu0 %v210, 96
    %v395 = vpop.permute.xlu0 %394
    %v396 = vsel %vm213, %v210, 0
    %v398 = vsel %vm213, %v395, 0
    %400 = vmatpush.xpose.msra.mxu0 0.0
    %401 = vmatpush.xpose.msra.mxu0 0.0
    %402 = vmatpush.xpose.msra.mxu0 0.0
    %403 = vmatpush.xpose.msra.mxu0 0.0
    %404 = vmatpush.xpose.msra.mxu0 0.0
    %405 = vmatpush.xpose.msra.mxu0 0.0
    %406 = vmatpush.xpose.msra.mxu0 0.0
    %407 = vmatpush.xpose.msra.mxu0 0.0
    %408 = vmatpush.xpose.msra.mxu0 0.0
    %409 = vmatpush.xpose.msra.mxu0 0.0
    %410 = vmatpush.xpose.msra.mxu0 0.0
    %411 = vmatpush.xpose.msra.mxu0 0.0
    %412 = vmatpush.xpose.msra.mxu0 0.0
    %413 = vmatpush.xpose.msra.mxu0 0.0
    %414 = vmatpush.xpose.msra.mxu0 0.0
    %415 = vmatpush.xpose.msra.mxu0 %v398
    %416 = vmatmul.f32.gmra.mxu0 %v396
    %v417 = vpop.f32.mrf.mxu0
    %v418 = vadd.f32 0.0, %v417
    %419 = vdwg.mxu0
    %v420 = vsel %vm213, %v236, -inf
    %421 = vmax.xlane.f32.xlu0 %v420
    %v422 = vpop.xlane.xlu0 %421
    %v423 = vsel %vm213, %v262, -inf
    %424 = vmax.xlane.f32.xlu0 %v423
    %v425 = vpop.xlane.xlu0 %424
    %v426 = vsel %vm213, %v288, -inf
    %427 = vmax.xlane.f32.xlu0 %v426
    %v428 = vpop.xlane.xlu0 %427
    %v429 = vsel %vm213, %v314, -inf
    %430 = vmax.xlane.f32.xlu0 %v429
    %v431 = vpop.xlane.xlu0 %430
    %v432 = vsel %vm213, %v340, -inf
    %433 = vmax.xlane.f32.xlu0 %v432
    %v434 = vpop.xlane.xlu0 %433
    %v435 = vsel %vm213, %v366, -inf
    %436 = vmax.xlane.f32.xlu0 %v435
    %v437 = vpop.xlane.xlu0 %436
    %v438 = vsel %vm213, %v392, -inf
    %439 = vmax.xlane.f32.xlu0 %v438
    %v440 = vpop.xlane.xlu0 %439
    %v441 = vsel %vm213, %v418, -inf
    %442 = vmax.xlane.f32.xlu0 %v441
    %v443 = vpop.xlane.xlu0 %442
    %v444 = vsub.f32 %v236, %v422
    %v445 = vsub.f32 %v262, %v425
    %v446 = vsub.f32 %v288, %v428
    %v447 = vsub.f32 %v314, %v431
    %v448 = vsub.f32 %v340, %v434
    %v449 = vsub.f32 %v366, %v437
    %v450 = vsub.f32 %v392, %v440
    %v451 = vsub.f32 %v418, %v443
    %v452 = vmul.f32 %v444, 1.442695
    %v453 = vpow.pop %v452
    %v454 = vmul.f32 %v445, 1.442695
    %v455 = vpow.pop %v454
    %v456 = vmul.f32 %v446, 1.442695
    %v457 = vpow.pop %v456
    %v458 = vmul.f32 %v447, 1.442695
    %v459 = vpow.pop %v458
    %v460 = vmul.f32 %v448, 1.442695
    %v461 = vpow.pop %v460
    %v462 = vmul.f32 %v449, 1.442695
    %v463 = vpow.pop %v462
    %v464 = vmul.f32 %v450, 1.442695
    %v465 = vpow.pop %v464
    %v466 = vmul.f32 %v451, 1.442695
    %v467 = vpow.pop %v466
    %v468 = vsel %vm213, %v453, 0.0
    %469 = vadd.xlane.f32.xlu0 %v468
    %v470 = vpop.xlane.xlu0 %469
    %v471 = vsel %vm213, %v455, 0.0
    %472 = vadd.xlane.f32.xlu0 %v471
    %v473 = vpop.xlane.xlu0 %472
    %v474 = vsel %vm213, %v457, 0.0
    %475 = vadd.xlane.f32.xlu0 %v474
    %v476 = vpop.xlane.xlu0 %475
    %v477 = vsel %vm213, %v459, 0.0
    %478 = vadd.xlane.f32.xlu0 %v477
    %v479 = vpop.xlane.xlu0 %478
    %v480 = vsel %vm213, %v461, 0.0
    %481 = vadd.xlane.f32.xlu0 %v480
    %v482 = vpop.xlane.xlu0 %481
    %v483 = vsel %vm213, %v463, 0.0
    %484 = vadd.xlane.f32.xlu0 %v483
    %v485 = vpop.xlane.xlu0 %484
    %v486 = vsel %vm213, %v465, 0.0
    %487 = vadd.xlane.f32.xlu0 %v486
    %v488 = vpop.xlane.xlu0 %487
    %v489 = vsel %vm213, %v467, 0.0
    %490 = vadd.xlane.f32.xlu0 %v489
    %v491 = vpop.xlane.xlu0 %490
    %v492 = vrcp.pop %v470
    %v493 = vrcp.pop %v473
    %v494 = vrcp.pop %v476
    %v495 = vrcp.pop %v479
    %v496 = vrcp.pop %v482
    %v497 = vrcp.pop %v485
    %v498 = vrcp.pop %v488
    %v499 = vrcp.pop %v491
    %v500 = vmul.f32 %v453, %v492
    %v501 = vmul.f32 %v455, %v493
    %v502 = vmul.f32 %v457, %v494
    %v503 = vmul.f32 %v459, %v495
    %v504 = vmul.f32 %v461, %v496
    %v505 = vmul.f32 %v463, %v497
    %v506 = vmul.f32 %v465, %v498
    %v507 = vmul.f32 %v467, %v499
    %508 = vrot.lane.b32.xlu0 %v193, 64
    %v509 = vpop.permute.xlu0 %508
    %v512 = vsel %vm213, %v500, 0
    %514 = vmatpush.msra.mxu0 0.0
    %515 = vmatpush.msra.mxu0 0.0
    %516 = vmatpush.msra.mxu0 0.0
    %517 = vmatpush.msra.mxu0 0.0
    %518 = vmatpush.msra.mxu0 0.0
    %519 = vmatpush.msra.mxu0 0.0
    %520 = vmatpush.msra.mxu0 0.0
    %521 = vmatpush.msra.mxu0 0.0
    %522 = vmatpush.msra.mxu0 0.0
    %523 = vmatpush.msra.mxu0 0.0
    %524 = vmatpush.msra.mxu0 0.0
    %525 = vmatpush.msra.mxu0 0.0
    %526 = vmatpush.msra.mxu0 0.0
    %527 = vmatpush.msra.mxu0 0.0
    %528 = vmatpush.msra.mxu0 0.0
    %529 = vmatpush.msra.mxu0 %v509
    %530 = vmatmul.f32.gmra.mxu0 %v512
    %v531 = vpop.f32.mrf.mxu0
    %v532 = vadd.f32 0.0, %v531
    %533 = vdwg.mxu0
    %534 = vrot.lane.b32.xlu0 %v195, 64
    %v535 = vpop.permute.xlu0 %534
    %v538 = vsel %vm213, %v501, 0
    %540 = vmatpush.msra.mxu0 0.0
    %541 = vmatpush.msra.mxu0 0.0
    %542 = vmatpush.msra.mxu0 0.0
    %543 = vmatpush.msra.mxu0 0.0
    %544 = vmatpush.msra.mxu0 0.0
    %545 = vmatpush.msra.mxu0 0.0
    %546 = vmatpush.msra.mxu0 0.0
    %547 = vmatpush.msra.mxu0 0.0
    %548 = vmatpush.msra.mxu0 0.0
    %549 = vmatpush.msra.mxu0 0.0
    %550 = vmatpush.msra.mxu0 0.0
    %551 = vmatpush.msra.mxu0 0.0
    %552 = vmatpush.msra.mxu0 0.0
    %553 = vmatpush.msra.mxu0 0.0
    %554 = vmatpush.msra.mxu0 0.0
    %555 = vmatpush.msra.mxu0 %v535
    %556 = vmatmul.f32.gmra.mxu0 %v538
    %v557 = vpop.f32.mrf.mxu0
    %v558 = vadd.f32 0.0, %v557
    %559 = vdwg.mxu0
    %560 = vrot.lane.b32.xlu0 %v200, 64
    %v561 = vpop.permute.xlu0 %560
    %v564 = vsel %vm213, %v502, 0
    %566 = vmatpush.msra.mxu0 0.0
    %567 = vmatpush.msra.mxu0 0.0
    %568 = vmatpush.msra.mxu0 0.0
    %569 = vmatpush.msra.mxu0 0.0
    %570 = vmatpush.msra.mxu0 0.0
    %571 = vmatpush.msra.mxu0 0.0
    %572 = vmatpush.msra.mxu0 0.0
    %573 = vmatpush.msra.mxu0 0.0
    %574 = vmatpush.msra.mxu0 0.0
    %575 = vmatpush.msra.mxu0 0.0
    %576 = vmatpush.msra.mxu0 0.0
    %577 = vmatpush.msra.mxu0 0.0
    %578 = vmatpush.msra.mxu0 0.0
    %579 = vmatpush.msra.mxu0 0.0
    %580 = vmatpush.msra.mxu0 0.0
    %581 = vmatpush.msra.mxu0 %v561
    %582 = vmatmul.f32.gmra.mxu0 %v564
    %v583 = vpop.f32.mrf.mxu0
    %v584 = vadd.f32 0.0, %v583
    %585 = vdwg.mxu0
    %586 = vrot.lane.b32.xlu0 %v202, 64
    %v587 = vpop.permute.xlu0 %586
    %v590 = vsel %vm213, %v503, 0
    %592 = vmatpush.msra.mxu0 0.0
    %593 = vmatpush.msra.mxu0 0.0
    %594 = vmatpush.msra.mxu0 0.0
    %595 = vmatpush.msra.mxu0 0.0
    %596 = vmatpush.msra.mxu0 0.0
    %597 = vmatpush.msra.mxu0 0.0
    %598 = vmatpush.msra.mxu0 0.0
    %599 = vmatpush.msra.mxu0 0.0
    %600 = vmatpush.msra.mxu0 0.0
    %601 = vmatpush.msra.mxu0 0.0
    %602 = vmatpush.msra.mxu0 0.0
    %603 = vmatpush.msra.mxu0 0.0
    %604 = vmatpush.msra.mxu0 0.0
    %605 = vmatpush.msra.mxu0 0.0
    %606 = vmatpush.msra.mxu0 0.0
    %607 = vmatpush.msra.mxu0 %v587
    %608 = vmatmul.f32.gmra.mxu0 %v590
    %v609 = vpop.f32.mrf.mxu0
    %v610 = vadd.f32 0.0, %v609
    %611 = vdwg.mxu0
    %612 = vrot.lane.b32.xlu0 %v204, 64
    %v613 = vpop.permute.xlu0 %612
    %v616 = vsel %vm213, %v504, 0
    %618 = vmatpush.msra.mxu0 0.0
    %619 = vmatpush.msra.mxu0 0.0
    %620 = vmatpush.msra.mxu0 0.0
    %621 = vmatpush.msra.mxu0 0.0
    %622 = vmatpush.msra.mxu0 0.0
    %623 = vmatpush.msra.mxu0 0.0
    %624 = vmatpush.msra.mxu0 0.0
    %625 = vmatpush.msra.mxu0 0.0
    %626 = vmatpush.msra.mxu0 0.0
    %627 = vmatpush.msra.mxu0 0.0
    %628 = vmatpush.msra.mxu0 0.0
    %629 = vmatpush.msra.mxu0 0.0
    %630 = vmatpush.msra.mxu0 0.0
    %631 = vmatpush.msra.mxu0 0.0
    %632 = vmatpush.msra.mxu0 0.0
    %633 = vmatpush.msra.mxu0 %v613
    %634 = vmatmul.f32.gmra.mxu0 %v616
    %v635 = vpop.f32.mrf.mxu0
    %v636 = vadd.f32 0.0, %v635
    %637 = vdwg.mxu0
    %638 = vrot.lane.b32.xlu0 %v206, 64
    %v639 = vpop.permute.xlu0 %638
    %v642 = vsel %vm213, %v505, 0
    %644 = vmatpush.msra.mxu0 0.0
    %645 = vmatpush.msra.mxu0 0.0
    %646 = vmatpush.msra.mxu0 0.0
    %647 = vmatpush.msra.mxu0 0.0
    %648 = vmatpush.msra.mxu0 0.0
    %649 = vmatpush.msra.mxu0 0.0
    %650 = vmatpush.msra.mxu0 0.0
    %651 = vmatpush.msra.mxu0 0.0
    %652 = vmatpush.msra.mxu0 0.0
    %653 = vmatpush.msra.mxu0 0.0
    %654 = vmatpush.msra.mxu0 0.0
    %655 = vmatpush.msra.mxu0 0.0
    %656 = vmatpush.msra.mxu0 0.0
    %657 = vmatpush.msra.mxu0 0.0
    %658 = vmatpush.msra.mxu0 0.0
    %659 = vmatpush.msra.mxu0 %v639
    %660 = vmatmul.f32.gmra.mxu0 %v642
    %v661 = vpop.f32.mrf.mxu0
    %v662 = vadd.f32 0.0, %v661
    %663 = vdwg.mxu0
    %664 = vrot.lane.b32.xlu0 %v208, 64
    %v665 = vpop.permute.xlu0 %664
    %v668 = vsel %vm213, %v506, 0
    %670 = vmatpush.msra.mxu0 0.0
    %671 = vmatpush.msra.mxu0 0.0
    %672 = vmatpush.msra.mxu0 0.0
    %673 = vmatpush.msra.mxu0 0.0
    %674 = vmatpush.msra.mxu0 0.0
    %675 = vmatpush.msra.mxu0 0.0
    %676 = vmatpush.msra.mxu0 0.0
    %677 = vmatpush.msra.mxu0 0.0
    %678 = vmatpush.msra.mxu0 0.0
    %679 = vmatpush.msra.mxu0 0.0
    %680 = vmatpush.msra.mxu0 0.0
    %681 = vmatpush.msra.mxu0 0.0
    %682 = vmatpush.msra.mxu0 0.0
    %683 = vmatpush.msra.mxu0 0.0
    %684 = vmatpush.msra.mxu0 0.0
    %685 = vmatpush.msra.mxu0 %v665
    %686 = vmatmul.f32.gmra.mxu0 %v668
    %v687 = vpop.f32.mrf.mxu0
    %v688 = vadd.f32 0.0, %v687
    %689 = vdwg.mxu0
    %690 = vrot.lane.b32.xlu0 %v210, 64
    %v691 = vpop.permute.xlu0 %690
    %v694 = vsel %vm213, %v507, 0
    %696 = vmatpush.msra.mxu0 0.0
    %697 = vmatpush.msra.mxu0 0.0
    %698 = vmatpush.msra.mxu0 0.0
    %699 = vmatpush.msra.mxu0 0.0
    %700 = vmatpush.msra.mxu0 0.0
    %701 = vmatpush.msra.mxu0 0.0
    %702 = vmatpush.msra.mxu0 0.0
    %703 = vmatpush.msra.mxu0 0.0
    %704 = vmatpush.msra.mxu0 0.0
    %705 = vmatpush.msra.mxu0 0.0
    %706 = vmatpush.msra.mxu0 0.0
    %707 = vmatpush.msra.mxu0 0.0
    %708 = vmatpush.msra.mxu0 0.0
    %709 = vmatpush.msra.mxu0 0.0
    %710 = vmatpush.msra.mxu0 0.0
    %711 = vmatpush.msra.mxu0 %v691
    %712 = vmatmul.f32.gmra.mxu0 %v694
    %v713 = vpop.f32.mrf.mxu0
    %v714 = vadd.f32 0.0, %v713
    %715 = vdwg.mxu0
    %718 = vrot.lane.b32.xlu0 %v584, 8
    %v719 = vpop.permute.xlu0 %718
    %720 = vrot.lane.b32.xlu0 %v610, 8
    %v721 = vpop.permute.xlu0 %720
    %726 = vrot.lane.b32.xlu0 %v636, 16
    %v727 = vpop.permute.xlu0 %726
    %728 = vrot.lane.b32.xlu0 %v662, 16
    %v729 = vpop.permute.xlu0 %728
    %734 = vrot.lane.b32.xlu0 %v688, 24
    %v735 = vpop.permute.xlu0 %734
    %736 = vrot.lane.b32.xlu0 %v714, 24
    %v737 = vpop.permute.xlu0 %736
    %v740 = vsel %vm213, %v532, %v719
    %v741 = vsel %vm213, %v558, %v721
    %vm742 = vcmask 130048
    %v743 = vsel %vm742, %v740, %v727
    %v744 = vsel %vm742, %v741, %v729
    %vm745 = vcmask 195584
    %v746 = vsel %vm745, %v743, %v735
    %v747 = vsel %vm745, %v744, %v737
    %v748 = vpack.c.bf16 %v747, %v746
    %v749 = vld [vmem:[%s4] sm:$0xf]
    %v750 = vld [vmem:[%s4 + $0x4] sm:$0xf]
    %v751 = vld [vmem:[%s4 + $0x8] sm:$0xf]
    %v752 = vld [vmem:[%s4 + $0xc] sm:$0xf]
    %v753 = vperm.slane %v158, 0
    %v758 = vunpack.c.l.b16 %v749
    %v759 = vunpack.c.l.b16 %v750
    %v760 = vunpack.c.l.b16 %v751
    %v761 = vunpack.c.l.b16 %v752
    %v762 = vpack.c.b16 %v759, %v758
    %v763 = vpack.c.b16 %v761, %v760
    %v767 = vsel %vm100, %v748, 0
    %769 = vmatpush.bf16.msra.mxu0 0
    %770 = vmatpush.bf16.msra.mxu0 0
    %771 = vmatpush.bf16.msra.mxu0 0
    %772 = vmatpush.bf16.msra.mxu0 0
    %773 = vmatpush.bf16.msra.mxu0 0
    %774 = vmatpush.bf16.msra.mxu0 0
    %775 = vmatpush.bf16.msra.mxu0 %v763
    %776 = vmatpush.bf16.msra.mxu0 %v762
    %777 = vmatmul.bf16.gmra.mxu0 %v767
    %v778 = vpop.f32.mrf.mxu0
    %v779 = vadd.f32 %v753, %v778
    %v780 = vpop.f32.mrf.mxu0
    %v781 = vadd.f32 %v753, %v780
    %782 = vdwg.mxu0
    %v783 = vadd.f32 %v156, %v779
    %v784 = vadd.f32 %v157, %v781
    %v785 = vsel %vm100, %v783, 0.0
    %786 = vadd.xlane.f32.xlu0 %v785
    %v787 = vpop.xlane.xlu0 %786
    %v788 = vsel %vm100, %v784, 0.0
    %789 = vadd.xlane.f32.xlu0 %v788
    %v790 = vpop.xlane.xlu0 %789
    %v791 = vmul.f32 %v787, %v113
    %v792 = vmul.f32 %v790, %v113
    %v793 = vsub.f32 %v783, %v791
    %v794 = vsub.f32 %v784, %v792
    %v795 = vmul.f32 %v793, %v793
    %v796 = vmul.f32 %v794, %v794
    %v797 = vsel %vm100, %v795, 0.0
    %798 = vadd.xlane.f32.xlu0 %v797
    %v799 = vpop.xlane.xlu0 %798
    %v800 = vsel %vm100, %v796, 0.0
    %801 = vadd.xlane.f32.xlu0 %v800
    %v802 = vpop.xlane.xlu0 %801
    %v803 = vmul.f32 %v799, %v113
    %v804 = vmul.f32 %v802, %v113
    %v805 = vadd.f32 %v803, 1e-12
    %v806 = vadd.f32 %v804, 1e-12
    %v807 = vrsqrt.pop %v805
    %v808 = vmul.f32 %v807, %v805
    %v809 = vmul.f32 %v808, %v807
    %v810 = vmul.f32 0.5, %v809
    %v811 = vsub.f32 1.5, %v810
    %v812 = vmul.f32 %v807, %v811
    %vm813 = vweird.f32 %v805
    %vm814 = vweird.f32 %v807
    %vm815 = vmor %vm813, %vm814
    %v816 = vsel %vm815, %v807, %v812
    %v817 = vrsqrt.pop %v806
    %v818 = vmul.f32 %v817, %v806
    %v819 = vmul.f32 %v818, %v817
    %v820 = vmul.f32 0.5, %v819
    %v821 = vsub.f32 1.5, %v820
    %v822 = vmul.f32 %v817, %v821
    %vm823 = vweird.f32 %v806
    %vm824 = vweird.f32 %v817
    %vm825 = vmor %vm823, %vm824
    %v826 = vsel %vm825, %v817, %v822
    %v827 = vmul.f32 %v793, %v816
    %v828 = vmul.f32 %v794, %v826
    %v829 = vperm.slane %v158, 2
    %v830 = vmul.f32 %v827, %v829
    %v831 = vmul.f32 %v828, %v829
    %v832 = vperm.slane %v158, 3
    %v833 = vadd.f32 %v830, %v832
    %v834 = vadd.f32 %v831, %v832
    %v835 = vpack.c.bf16 %v834, %v833
    %v836 = vld [vmem:[%s5] sm:$0xf]
    %v837 = vld [vmem:[%s5 + $0x4] sm:$0xf]
    %v838 = vld [vmem:[%s5 + $0x8] sm:$0xf]
    %v839 = vld [vmem:[%s5 + $0xc] sm:$0xf]
    %v840 = vld [vmem:[%s6] sm:$0x1]
    %v842 = vperm.slane %v840, 0
    %v848 = vunpack.c.l.b16 %v836
    %v849 = vunpack.c.l.b16 %v837
    %v850 = vunpack.c.l.b16 %v838
    %v851 = vunpack.c.l.b16 %v839
    %v852 = vpack.c.b16 %v849, %v848
    %v853 = vpack.c.b16 %v851, %v850
    %v857 = vsel %vm100, %v835, 0
    %859 = vmatpush.bf16.msra.mxu0 0
    %860 = vmatpush.bf16.msra.mxu0 0
    %861 = vmatpush.bf16.msra.mxu0 0
    %862 = vmatpush.bf16.msra.mxu0 0
    %863 = vmatpush.bf16.msra.mxu0 0
    %864 = vmatpush.bf16.msra.mxu0 0
    %865 = vmatpush.bf16.msra.mxu0 %v853
    %866 = vmatpush.bf16.msra.mxu0 %v852
    %867 = vmatmul.bf16.gmra.mxu0 %v857
    %v868 = vpop.f32.mrf.mxu0
    %v869 = vadd.f32 %v842, %v868
    %v870 = vpop.f32.mrf.mxu0
    %v871 = vadd.f32 %v842, %v870
    %872 = vdwg.mxu0
    %v873 = vmul.f32 %v869, %v869
    %v874 = vmul.f32 %v871, %v871
    %v875 = vmul.f32 %v869, %v873
    %v876 = vmul.f32 %v871, %v874
    %v877 = vmul.f32 %v875, 0.044715
    %v878 = vmul.f32 %v876, 0.044715
    %v879 = vadd.f32 %v869, %v877
    %v880 = vadd.f32 %v871, %v878
    %v881 = vmul.f32 %v879, 0.7978846
    %v882 = vmul.f32 %v880, 0.7978846
    %v883 = vtanh.pop %v881
    %v884 = vtanh.pop %v882
    %v885 = vadd.f32 %v883, 1.0
    %v886 = vadd.f32 %v884, 1.0
    %v887 = vmul.f32 %v885, 0.5
    %v888 = vmul.f32 %v886, 0.5
    %v889 = vmul.f32 %v869, %v887
    %v890 = vmul.f32 %v871, %v888
    %v891 = vpack.c.bf16 %v890, %v889
    %v892 = vld [vmem:[%s7] sm:$0xf]
    %v893 = vld [vmem:[%s7 + $0x4] sm:$0xf]
    %v894 = vld [vmem:[%s7 + $0x8] sm:$0xf]
    %v895 = vld [vmem:[%s7 + $0xc] sm:$0xf]
    %v896 = vld [vmem:[%s7 + $0x10] sm:$0xf]
    %v897 = vld [vmem:[%s7 + $0x14] sm:$0xf]
    %v898 = vld [vmem:[%s7 + $0x18] sm:$0xf]
    %v899 = vld [vmem:[%s7 + $0x1c] sm:$0xf]
    %v900 = vld [vmem:[%s7 + $0x20] sm:$0xf]
    %v901 = vld [vmem:[%s7 + $0x24] sm:$0xf]
    %v902 = vld [vmem:[%s7 + $0x28] sm:$0xf]
    %v903 = vld [vmem:[%s7 + $0x2c] sm:$0xf]
    %v904 = vld [vmem:[%s7 + $0x30] sm:$0xf]
    %v905 = vld [vmem:[%s7 + $0x34] sm:$0xf]
    %v906 = vld [vmem:[%s7 + $0x38] sm:$0xf]
    %v907 = vld [vmem:[%s7 + $0x3c] sm:$0xf]
    %v908 = vperm.slane %v158, 1
    %v925 = vunpack.c.l.b16 %v892
    %v926 = vunpack.c.l.b16 %v893
    %v927 = vunpack.c.l.b16 %v894
    %v928 = vunpack.c.l.b16 %v895
    %v929 = vunpack.c.l.b16 %v896
    %v930 = vunpack.c.l.b16 %v897
    %v931 = vunpack.c.l.b16 %v898
    %v932 = vunpack.c.l.b16 %v899
    %v933 = vunpack.c.l.b16 %v900
    %v934 = vunpack.c.l.b16 %v901
    %v935 = vunpack.c.l.b16 %v902
    %v936 = vunpack.c.l.b16 %v903
    %v937 = vunpack.c.l.b16 %v904
    %v938 = vunpack.c.l.b16 %v905
    %v939 = vunpack.c.l.b16 %v906
    %v940 = vunpack.c.l.b16 %v907
    %v941 = vpack.c.b16 %v926, %v925
    %v942 = vpack.c.b16 %v928, %v927
    %v943 = vpack.c.b16 %v930, %v929
    %v944 = vpack.c.b16 %v932, %v931
    %v945 = vpack.c.b16 %v934, %v933
    %v946 = vpack.c.b16 %v936, %v935
    %v947 = vpack.c.b16 %v938, %v937
    %v948 = vpack.c.b16 %v940, %v939
    %957 = vmatpush.bf16.msra.mxu0 %v948
    %958 = vmatpush.bf16.msra.mxu0 %v947
    %959 = vmatpush.bf16.msra.mxu0 %v946
    %960 = vmatpush.bf16.msra.mxu0 %v945
    %961 = vmatpush.bf16.msra.mxu0 %v944
    %962 = vmatpush.bf16.msra.mxu0 %v943
    %963 = vmatpush.bf16.msra.mxu0 %v942
    %964 = vmatpush.bf16.msra.mxu0 %v941
    %965 = vmatmul.bf16.gmra.mxu0 %v891
    %v966 = vpop.f32.mrf.mxu0
    %v967 = vadd.f32 %v908, %v966
    %v968 = vpop.f32.mrf.mxu0
    %v969 = vadd.f32 %v908, %v968
    %970 = vdwg.mxu0
    %v971 = vadd.f32 %v833, %v967
    %v972 = vadd.f32 %v834, %v969
    %v973 = vsel %vm100, %v971, 0.0
    %974 = vadd.xlane.f32.xlu0 %v973
    %v975 = vpop.xlane.xlu0 %974
    %v976 = vsel %vm100, %v972, 0.0
    %977 = vadd.xlane.f32.xlu0 %v976
    %v978 = vpop.xlane.xlu0 %977
    %v979 = vmul.f32 %v975, %v113
    %v980 = vmul.f32 %v978, %v113
    %v981 = vsub.f32 %v971, %v979
    %v982 = vsub.f32 %v972, %v980
    %v983 = vmul.f32 %v981, %v981
    %v984 = vmul.f32 %v982, %v982
    %v985 = vsel %vm100, %v983, 0.0
    %986 = vadd.xlane.f32.xlu0 %v985
    %v987 = vpop.xlane.xlu0 %986
    %v988 = vsel %vm100, %v984, 0.0
    %989 = vadd.xlane.f32.xlu0 %v988
    %v990 = vpop.xlane.xlu0 %989
    %v991 = vmul.f32 %v987, %v113
    %v992 = vmul.f32 %v990, %v113
    %v993 = vadd.f32 %v991, 1e-12
    %v994 = vadd.f32 %v992, 1e-12
    %v995 = vrsqrt.pop %v993
    %v996 = vmul.f32 %v995, %v993
    %v997 = vmul.f32 %v996, %v995
    %v998 = vmul.f32 0.5, %v997
    %v999 = vsub.f32 1.5, %v998
    %v1000 = vmul.f32 %v995, %v999
    %vm1001 = vweird.f32 %v993
    %vm1002 = vweird.f32 %v995
    %vm1003 = vmor %vm1001, %vm1002
    %v1004 = vsel %vm1003, %v995, %v1000
    %v1005 = vrsqrt.pop %v994
    %v1006 = vmul.f32 %v1005, %v994
    %v1007 = vmul.f32 %v1006, %v1005
    %v1008 = vmul.f32 0.5, %v1007
    %v1009 = vsub.f32 1.5, %v1008
    %v1010 = vmul.f32 %v1005, %v1009
    %vm1011 = vweird.f32 %v994
    %vm1012 = vweird.f32 %v1005
    %vm1013 = vmor %vm1011, %vm1012
    %v1014 = vsel %vm1013, %v1005, %v1010
    %v1015 = vmul.f32 %v981, %v1004
    %v1016 = vmul.f32 %v982, %v1014
    %v1017 = vperm.slane %v158, 4
    %v1018 = vmul.f32 %v1015, %v1017
    %v1019 = vmul.f32 %v1016, %v1017
    %v1020 = vperm.slane %v158, 5
    %v1021 = vadd.f32 %v1018, %v1020
    %v1022 = vadd.f32 %v1019, %v1020
    %s1023 = scalar_lea.vmem %s8, 8
    %v1024 = vld [vmem:[%s1023] sm:$0x3f]
    %v1025 = vpack.c.bf16 %v1022, %v1021
    %s1026 = scalar_lea.vmem %s2, 16
    %v1027 = vld [vmem:[%s1026] sm:$0xf]
    %v1028 = vld [vmem:[%s1026 + $0x4] sm:$0xf]
    %v1029 = vld [vmem:[%s1026 + $0x8] sm:$0xf]
    %v1030 = vld [vmem:[%s1026 + $0xc] sm:$0xf]
    %s1031 = scalar_lea.vmem %s3, 1
    %v1032 = vld [vmem:[%s1031] sm:$0x1]
    %v1034 = vperm.slane %v1032, 0
    %v1040 = vunpack.c.l.b16 %v1027
    %v1041 = vunpack.c.l.b16 %v1028
    %v1042 = vunpack.c.l.b16 %v1029
    %v1043 = vunpack.c.l.b16 %v1030
    %v1044 = vpack.c.b16 %v1041, %v1040
    %v1045 = vpack.c.b16 %v1043, %v1042
    %v1049 = vsel %vm100, %v1025, 0
    %1051 = vmatpush.bf16.msra.mxu0 0
    %1052 = vmatpush.bf16.msra.mxu0 0
    %1053 = vmatpush.bf16.msra.mxu0 0
    %1054 = vmatpush.bf16.msra.mxu0 0
    %1055 = vmatpush.bf16.msra.mxu0 0
    %1056 = vmatpush.bf16.msra.mxu0 0
    %1057 = vmatpush.bf16.msra.mxu0 %v1045
    %1058 = vmatpush.bf16.msra.mxu0 %v1044
    %1059 = vmatmul.bf16.gmra.mxu0 %v1049
    %v1060 = vpop.f32.mrf.mxu0
    %v1061 = vadd.f32 %v1034, %v1060
    %v1062 = vpop.f32.mrf.mxu0
    %v1063 = vadd.f32 %v1034, %v1062
    %1064 = vdwg.mxu0
    %1067 = vrot.lane.b32.xlu0 %v1061, 120
    %v1068 = vpop.permute.xlu0 %1067
    %1069 = vrot.lane.b32.xlu0 %v1063, 120
    %v1070 = vpop.permute.xlu0 %1069
    %1071 = vrot.lane.b32.xlu0 %v1061, 112
    %v1072 = vpop.permute.xlu0 %1071
    %1073 = vrot.lane.b32.xlu0 %v1063, 112
    %v1074 = vpop.permute.xlu0 %1073
    %1075 = vrot.lane.b32.xlu0 %v1061, 104
    %v1076 = vpop.permute.xlu0 %1075
    %1077 = vrot.lane.b32.xlu0 %v1063, 104
    %v1078 = vpop.permute.xlu0 %1077
    %1079 = vrot.lane.b32.xlu0 %v1061, 96
    %v1080 = vpop.permute.xlu0 %1079
    %v1081 = vsel %vm213, %v1061, 0
    %v1083 = vsel %vm213, %v1080, 0
    %1085 = vmatpush.xpose.msra.mxu0 0.0
    %1086 = vmatpush.xpose.msra.mxu0 0.0
    %1087 = vmatpush.xpose.msra.mxu0 0.0
    %1088 = vmatpush.xpose.msra.mxu0 0.0
    %1089 = vmatpush.xpose.msra.mxu0 0.0
    %1090 = vmatpush.xpose.msra.mxu0 0.0
    %1091 = vmatpush.xpose.msra.mxu0 0.0
    %1092 = vmatpush.xpose.msra.mxu0 0.0
    %1093 = vmatpush.xpose.msra.mxu0 0.0
    %1094 = vmatpush.xpose.msra.mxu0 0.0
    %1095 = vmatpush.xpose.msra.mxu0 0.0
    %1096 = vmatpush.xpose.msra.mxu0 0.0
    %1097 = vmatpush.xpose.msra.mxu0 0.0
    %1098 = vmatpush.xpose.msra.mxu0 0.0
    %1099 = vmatpush.xpose.msra.mxu0 0.0
    %1100 = vmatpush.xpose.msra.mxu0 %v1083
    %1101 = vmatmul.f32.gmra.mxu0 %v1081
    %v1102 = vpop.f32.mrf.mxu0
    %v1103 = vadd.f32 0.0, %v1102
    %1104 = vdwg.mxu0
    %1105 = vrot.lane.b32.xlu0 %v1063, 96
    %v1106 = vpop.permute.xlu0 %1105
    %v1107 = vsel %vm213, %v1063, 0
    %v1109 = vsel %vm213, %v1106, 0
    %1111 = vmatpush.xpose.msra.mxu0 0.0
    %1112 = vmatpush.xpose.msra.mxu0 0.0
    %1113 = vmatpush.xpose.msra.mxu0 0.0
    %1114 = vmatpush.xpose.msra.mxu0 0.0
    %1115 = vmatpush.xpose.msra.mxu0 0.0
    %1116 = vmatpush.xpose.msra.mxu0 0.0
    %1117 = vmatpush.xpose.msra.mxu0 0.0
    %1118 = vmatpush.xpose.msra.mxu0 0.0
    %1119 = vmatpush.xpose.msra.mxu0 0.0
    %1120 = vmatpush.xpose.msra.mxu0 0.0
    %1121 = vmatpush.xpose.msra.mxu0 0.0
    %1122 = vmatpush.xpose.msra.mxu0 0.0
    %1123 = vmatpush.xpose.msra.mxu0 0.0
    %1124 = vmatpush.xpose.msra.mxu0 0.0
    %1125 = vmatpush.xpose.msra.mxu0 0.0
    %1126 = vmatpush.xpose.msra.mxu0 %v1109
    %1127 = vmatmul.f32.gmra.mxu0 %v1107
    %v1128 = vpop.f32.mrf.mxu0
    %v1129 = vadd.f32 0.0, %v1128
    %1130 = vdwg.mxu0
    %1131 = vrot.lane.b32.xlu0 %v1068, 96
    %v1132 = vpop.permute.xlu0 %1131
    %v1133 = vsel %vm213, %v1068, 0
    %v1135 = vsel %vm213, %v1132, 0
    %1137 = vmatpush.xpose.msra.mxu0 0.0
    %1138 = vmatpush.xpose.msra.mxu0 0.0
    %1139 = vmatpush.xpose.msra.mxu0 0.0
    %1140 = vmatpush.xpose.msra.mxu0 0.0
    %1141 = vmatpush.xpose.msra.mxu0 0.0
    %1142 = vmatpush.xpose.msra.mxu0 0.0
    %1143 = vmatpush.xpose.msra.mxu0 0.0
    %1144 = vmatpush.xpose.msra.mxu0 0.0
    %1145 = vmatpush.xpose.msra.mxu0 0.0
    %1146 = vmatpush.xpose.msra.mxu0 0.0
    %1147 = vmatpush.xpose.msra.mxu0 0.0
    %1148 = vmatpush.xpose.msra.mxu0 0.0
    %1149 = vmatpush.xpose.msra.mxu0 0.0
    %1150 = vmatpush.xpose.msra.mxu0 0.0
    %1151 = vmatpush.xpose.msra.mxu0 0.0
    %1152 = vmatpush.xpose.msra.mxu0 %v1135
    %1153 = vmatmul.f32.gmra.mxu0 %v1133
    %v1154 = vpop.f32.mrf.mxu0
    %v1155 = vadd.f32 0.0, %v1154
    %1156 = vdwg.mxu0
    %1157 = vrot.lane.b32.xlu0 %v1070, 96
    %v1158 = vpop.permute.xlu0 %1157
    %v1159 = vsel %vm213, %v1070, 0
    %v1161 = vsel %vm213, %v1158, 0
    %1163 = vmatpush.xpose.msra.mxu0 0.0
    %1164 = vmatpush.xpose.msra.mxu0 0.0
    %1165 = vmatpush.xpose.msra.mxu0 0.0
    %1166 = vmatpush.xpose.msra.mxu0 0.0
    %1167 = vmatpush.xpose.msra.mxu0 0.0
    %1168 = vmatpush.xpose.msra.mxu0 0.0
    %1169 = vmatpush.xpose.msra.mxu0 0.0
    %1170 = vmatpush.xpose.msra.mxu0 0.0
    %1171 = vmatpush.xpose.msra.mxu0 0.0
    %1172 = vmatpush.xpose.msra.mxu0 0.0
    %1173 = vmatpush.xpose.msra.mxu0 0.0
    %1174 = vmatpush.xpose.msra.mxu0 0.0
    %1175 = vmatpush.xpose.msra.mxu0 0.0
    %1176 = vmatpush.xpose.msra.mxu0 0.0
    %1177 = vmatpush.xpose.msra.mxu0 0.0
    %1178 = vmatpush.xpose.msra.mxu0 %v1161
    %1179 = vmatmul.f32.gmra.mxu0 %v1159
    %v1180 = vpop.f32.mrf.mxu0
    %v1181 = vadd.f32 0.0, %v1180
    %1182 = vdwg.mxu0
    %1183 = vrot.lane.b32.xlu0 %v1072, 96
    %v1184 = vpop.permute.xlu0 %1183
    %v1185 = vsel %vm213, %v1072, 0
    %v1187 = vsel %vm213, %v1184, 0
    %1189 = vmatpush.xpose.msra.mxu0 0.0
    %1190 = vmatpush.xpose.msra.mxu0 0.0
    %1191 = vmatpush.xpose.msra.mxu0 0.0
    %1192 = vmatpush.xpose.msra.mxu0 0.0
    %1193 = vmatpush.xpose.msra.mxu0 0.0
    %1194 = vmatpush.xpose.msra.mxu0 0.0
    %1195 = vmatpush.xpose.msra.mxu0 0.0
    %1196 = vmatpush.xpose.msra.mxu0 0.0
    %1197 = vmatpush.xpose.msra.mxu0 0.0
    %1198 = vmatpush.xpose.msra.mxu0 0.0
    %1199 = vmatpush.xpose.msra.mxu0 0.0
    %1200 = vmatpush.xpose.msra.mxu0 0.0
    %1201 = vmatpush.xpose.msra.mxu0 0.0
    %1202 = vmatpush.xpose.msra.mxu0 0.0
    %1203 = vmatpush.xpose.msra.mxu0 0.0
    %1204 = vmatpush.xpose.msra.mxu0 %v1187
    %1205 = vmatmul.f32.gmra.mxu0 %v1185
    %v1206 = vpop.f32.mrf.mxu0
    %v1207 = vadd.f32 0.0, %v1206
    %1208 = vdwg.mxu0
    %1209 = vrot.lane.b32.xlu0 %v1074, 96
    %v1210 = vpop.permute.xlu0 %1209
    %v1211 = vsel %vm213, %v1074, 0
    %v1213 = vsel %vm213, %v1210, 0
    %1215 = vmatpush.xpose.msra.mxu0 0.0
    %1216 = vmatpush.xpose.msra.mxu0 0.0
    %1217 = vmatpush.xpose.msra.mxu0 0.0
    %1218 = vmatpush.xpose.msra.mxu0 0.0
    %1219 = vmatpush.xpose.msra.mxu0 0.0
    %1220 = vmatpush.xpose.msra.mxu0 0.0
    %1221 = vmatpush.xpose.msra.mxu0 0.0
    %1222 = vmatpush.xpose.msra.mxu0 0.0
    %1223 = vmatpush.xpose.msra.mxu0 0.0
    %1224 = vmatpush.xpose.msra.mxu0 0.0
    %1225 = vmatpush.xpose.msra.mxu0 0.0
    %1226 = vmatpush.xpose.msra.mxu0 0.0
    %1227 = vmatpush.xpose.msra.mxu0 0.0
    %1228 = vmatpush.xpose.msra.mxu0 0.0
    %1229 = vmatpush.xpose.msra.mxu0 0.0
    %1230 = vmatpush.xpose.msra.mxu0 %v1213
    %1231 = vmatmul.f32.gmra.mxu0 %v1211
    %v1232 = vpop.f32.mrf.mxu0
    %v1233 = vadd.f32 0.0, %v1232
    %1234 = vdwg.mxu0
    %1235 = vrot.lane.b32.xlu0 %v1076, 96
    %v1236 = vpop.permute.xlu0 %1235
    %v1237 = vsel %vm213, %v1076, 0
    %v1239 = vsel %vm213, %v1236, 0
    %1241 = vmatpush.xpose.msra.mxu0 0.0
    %1242 = vmatpush.xpose.msra.mxu0 0.0
    %1243 = vmatpush.xpose.msra.mxu0 0.0
    %1244 = vmatpush.xpose.msra.mxu0 0.0
    %1245 = vmatpush.xpose.msra.mxu0 0.0
    %1246 = vmatpush.xpose.msra.mxu0 0.0
    %1247 = vmatpush.xpose.msra.mxu0 0.0
    %1248 = vmatpush.xpose.msra.mxu0 0.0
    %1249 = vmatpush.xpose.msra.mxu0 0.0
    %1250 = vmatpush.xpose.msra.mxu0 0.0
    %1251 = vmatpush.xpose.msra.mxu0 0.0
    %1252 = vmatpush.xpose.msra.mxu0 0.0
    %1253 = vmatpush.xpose.msra.mxu0 0.0
    %1254 = vmatpush.xpose.msra.mxu0 0.0
    %1255 = vmatpush.xpose.msra.mxu0 0.0
    %1256 = vmatpush.xpose.msra.mxu0 %v1239
    %1257 = vmatmul.f32.gmra.mxu0 %v1237
    %v1258 = vpop.f32.mrf.mxu0
    %v1259 = vadd.f32 0.0, %v1258
    %1260 = vdwg.mxu0
    %1261 = vrot.lane.b32.xlu0 %v1078, 96
    %v1262 = vpop.permute.xlu0 %1261
    %v1263 = vsel %vm213, %v1078, 0
    %v1265 = vsel %vm213, %v1262, 0
    %1267 = vmatpush.xpose.msra.mxu0 0.0
    %1268 = vmatpush.xpose.msra.mxu0 0.0
    %1269 = vmatpush.xpose.msra.mxu0 0.0
    %1270 = vmatpush.xpose.msra.mxu0 0.0
    %1271 = vmatpush.xpose.msra.mxu0 0.0
    %1272 = vmatpush.xpose.msra.mxu0 0.0
    %1273 = vmatpush.xpose.msra.mxu0 0.0
    %1274 = vmatpush.xpose.msra.mxu0 0.0
    %1275 = vmatpush.xpose.msra.mxu0 0.0
    %1276 = vmatpush.xpose.msra.mxu0 0.0
    %1277 = vmatpush.xpose.msra.mxu0 0.0
    %1278 = vmatpush.xpose.msra.mxu0 0.0
    %1279 = vmatpush.xpose.msra.mxu0 0.0
    %1280 = vmatpush.xpose.msra.mxu0 0.0
    %1281 = vmatpush.xpose.msra.mxu0 0.0
    %1282 = vmatpush.xpose.msra.mxu0 %v1265
    %1283 = vmatmul.f32.gmra.mxu0 %v1263
    %v1284 = vpop.f32.mrf.mxu0
    %v1285 = vadd.f32 0.0, %v1284
    %1286 = vdwg.mxu0
    %v1287 = vsel %vm213, %v1103, -inf
    %1288 = vmax.xlane.f32.xlu0 %v1287
    %v1289 = vpop.xlane.xlu0 %1288
    %v1290 = vsel %vm213, %v1129, -inf
    %1291 = vmax.xlane.f32.xlu0 %v1290
    %v1292 = vpop.xlane.xlu0 %1291
    %v1293 = vsel %vm213, %v1155, -inf
    %1294 = vmax.xlane.f32.xlu0 %v1293
    %v1295 = vpop.xlane.xlu0 %1294
    %v1296 = vsel %vm213, %v1181, -inf
    %1297 = vmax.xlane.f32.xlu0 %v1296
    %v1298 = vpop.xlane.xlu0 %1297
    %v1299 = vsel %vm213, %v1207, -inf
    %1300 = vmax.xlane.f32.xlu0 %v1299
    %v1301 = vpop.xlane.xlu0 %1300
    %v1302 = vsel %vm213, %v1233, -inf
    %1303 = vmax.xlane.f32.xlu0 %v1302
    %v1304 = vpop.xlane.xlu0 %1303
    %v1305 = vsel %vm213, %v1259, -inf
    %1306 = vmax.xlane.f32.xlu0 %v1305
    %v1307 = vpop.xlane.xlu0 %1306
    %v1308 = vsel %vm213, %v1285, -inf
    %1309 = vmax.xlane.f32.xlu0 %v1308
    %v1310 = vpop.xlane.xlu0 %1309
    %v1311 = vsub.f32 %v1103, %v1289
    %v1312 = vsub.f32 %v1129, %v1292
    %v1313 = vsub.f32 %v1155, %v1295
    %v1314 = vsub.f32 %v1181, %v1298
    %v1315 = vsub.f32 %v1207, %v1301
    %v1316 = vsub.f32 %v1233, %v1304
    %v1317 = vsub.f32 %v1259, %v1307
    %v1318 = vsub.f32 %v1285, %v1310
    %v1319 = vmul.f32 %v1311, 1.442695
    %v1320 = vpow.pop %v1319
    %v1321 = vmul.f32 %v1312, 1.442695
    %v1322 = vpow.pop %v1321
    %v1323 = vmul.f32 %v1313, 1.442695
    %v1324 = vpow.pop %v1323
    %v1325 = vmul.f32 %v1314, 1.442695
    %v1326 = vpow.pop %v1325
    %v1327 = vmul.f32 %v1315, 1.442695
    %v1328 = vpow.pop %v1327
    %v1329 = vmul.f32 %v1316, 1.442695
    %v1330 = vpow.pop %v1329
    %v1331 = vmul.f32 %v1317, 1.442695
    %v1332 = vpow.pop %v1331
    %v1333 = vmul.f32 %v1318, 1.442695
    %v1334 = vpow.pop %v1333
    %v1335 = vsel %vm213, %v1320, 0.0
    %1336 = vadd.xlane.f32.xlu0 %v1335
    %v1337 = vpop.xlane.xlu0 %1336
    %v1338 = vsel %vm213, %v1322, 0.0
    %1339 = vadd.xlane.f32.xlu0 %v1338
    %v1340 = vpop.xlane.xlu0 %1339
    %v1341 = vsel %vm213, %v1324, 0.0
    %1342 = vadd.xlane.f32.xlu0 %v1341
    %v1343 = vpop.xlane.xlu0 %1342
    %v1344 = vsel %vm213, %v1326, 0.0
    %1345 = vadd.xlane.f32.xlu0 %v1344
    %v1346 = vpop.xlane.xlu0 %1345
    %v1347 = vsel %vm213, %v1328, 0.0
    %1348 = vadd.xlane.f32.xlu0 %v1347
    %v1349 = vpop.xlane.xlu0 %1348
    %v1350 = vsel %vm213, %v1330, 0.0
    %1351 = vadd.xlane.f32.xlu0 %v1350
    %v1352 = vpop.xlane.xlu0 %1351
    %v1353 = vsel %vm213, %v1332, 0.0
    %1354 = vadd.xlane.f32.xlu0 %v1353
    %v1355 = vpop.xlane.xlu0 %1354
    %v1356 = vsel %vm213, %v1334, 0.0
    %1357 = vadd.xlane.f32.xlu0 %v1356
    %v1358 = vpop.xlane.xlu0 %1357
    %v1359 = vrcp.pop %v1337
    %v1360 = vrcp.pop %v1340
    %v1361 = vrcp.pop %v1343
    %v1362 = vrcp.pop %v1346
    %v1363 = vrcp.pop %v1349
    %v1364 = vrcp.pop %v1352
    %v1365 = vrcp.pop %v1355
    %v1366 = vrcp.pop %v1358
    %v1367 = vmul.f32 %v1320, %v1359
    %v1368 = vmul.f32 %v1322, %v1360
    %v1369 = vmul.f32 %v1324, %v1361
    %v1370 = vmul.f32 %v1326, %v1362
    %v1371 = vmul.f32 %v1328, %v1363
    %v1372 = vmul.f32 %v1330, %v1364
    %v1373 = vmul.f32 %v1332, %v1365
    %v1374 = vmul.f32 %v1334, %v1366
    %1375 = vrot.lane.b32.xlu0 %v1061, 64
    %v1376 = vpop.permute.xlu0 %1375
    %v1379 = vsel %vm213, %v1367, 0
    %1381 = vmatpush.msra.mxu0 0.0
    %1382 = vmatpush.msra.mxu0 0.0
    %1383 = vmatpush.msra.mxu0 0.0
    %1384 = vmatpush.msra.mxu0 0.0
    %1385 = vmatpush.msra.mxu0 0.0
    %1386 = vmatpush.msra.mxu0 0.0
    %1387 = vmatpush.msra.mxu0 0.0
    %1388 = vmatpush.msra.mxu0 0.0
    %1389 = vmatpush.msra.mxu0 0.0
    %1390 = vmatpush.msra.mxu0 0.0
    %1391 = vmatpush.msra.mxu0 0.0
    %1392 = vmatpush.msra.mxu0 0.0
    %1393 = vmatpush.msra.mxu0 0.0
    %1394 = vmatpush.msra.mxu0 0.0
    %1395 = vmatpush.msra.mxu0 0.0
    %1396 = vmatpush.msra.mxu0 %v1376
    %1397 = vmatmul.f32.gmra.mxu0 %v1379
    %v1398 = vpop.f32.mrf.mxu0
    %v1399 = vadd.f32 0.0, %v1398
    %1400 = vdwg.mxu0
    %1401 = vrot.lane.b32.xlu0 %v1063, 64
    %v1402 = vpop.permute.xlu0 %1401
    %v1405 = vsel %vm213, %v1368, 0
    %1407 = vmatpush.msra.mxu0 0.0
    %1408 = vmatpush.msra.mxu0 0.0
    %1409 = vmatpush.msra.mxu0 0.0
    %1410 = vmatpush.msra.mxu0 0.0
    %1411 = vmatpush.msra.mxu0 0.0
    %1412 = vmatpush.msra.mxu0 0.0
    %1413 = vmatpush.msra.mxu0 0.0
    %1414 = vmatpush.msra.mxu0 0.0
    %1415 = vmatpush.msra.mxu0 0.0
    %1416 = vmatpush.msra.mxu0 0.0
    %1417 = vmatpush.msra.mxu0 0.0
    %1418 = vmatpush.msra.mxu0 0.0
    %1419 = vmatpush.msra.mxu0 0.0
    %1420 = vmatpush.msra.mxu0 0.0
    %1421 = vmatpush.msra.mxu0 0.0
    %1422 = vmatpush.msra.mxu0 %v1402
    %1423 = vmatmul.f32.gmra.mxu0 %v1405
    %v1424 = vpop.f32.mrf.mxu0
    %v1425 = vadd.f32 0.0, %v1424
    %1426 = vdwg.mxu0
    %1427 = vrot.lane.b32.xlu0 %v1068, 64
    %v1428 = vpop.permute.xlu0 %1427
    %v1431 = vsel %vm213, %v1369, 0
    %1433 = vmatpush.msra.mxu0 0.0
    %1434 = vmatpush.msra.mxu0 0.0
    %1435 = vmatpush.msra.mxu0 0.0
    %1436 = vmatpush.msra.mxu0 0.0
    %1437 = vmatpush.msra.mxu0 0.0
    %1438 = vmatpush.msra.mxu0 0.0
    %1439 = vmatpush.msra.mxu0 0.0
    %1440 = vmatpush.msra.mxu0 0.0
    %1441 = vmatpush.msra.mxu0 0.0
    %1442 = vmatpush.msra.mxu0 0.0
    %1443 = vmatpush.msra.mxu0 0.0
    %1444 = vmatpush.msra.mxu0 0.0
    %1445 = vmatpush.msra.mxu0 0.0
    %1446 = vmatpush.msra.mxu0 0.0
    %1447 = vmatpush.msra.mxu0 0.0
    %1448 = vmatpush.msra.mxu0 %v1428
    %1449 = vmatmul.f32.gmra.mxu0 %v1431
    %v1450 = vpop.f32.mrf.mxu0
    %v1451 = vadd.f32 0.0, %v1450
    %1452 = vdwg.mxu0
    %1453 = vrot.lane.b32.xlu0 %v1070, 64
    %v1454 = vpop.permute.xlu0 %1453
    %v1457 = vsel %vm213, %v1370, 0
    %1459 = vmatpush.msra.mxu0 0.0
    %1460 = vmatpush.msra.mxu0 0.0
    %1461 = vmatpush.msra.mxu0 0.0
    %1462 = vmatpush.msra.mxu0 0.0
    %1463 = vmatpush.msra.mxu0 0.0
    %1464 = vmatpush.msra.mxu0 0.0
    %1465 = vmatpush.msra.mxu0 0.0
    %1466 = vmatpush.msra.mxu0 0.0
    %1467 = vmatpush.msra.mxu0 0.0
    %1468 = vmatpush.msra.mxu0 0.0
    %1469 = vmatpush.msra.mxu0 0.0
    %1470 = vmatpush.msra.mxu0 0.0
    %1471 = vmatpush.msra.mxu0 0.0
    %1472 = vmatpush.msra.mxu0 0.0
    %1473 = vmatpush.msra.mxu0 0.0
    %1474 = vmatpush.msra.mxu0 %v1454
    %1475 = vmatmul.f32.gmra.mxu0 %v1457
    %v1476 = vpop.f32.mrf.mxu0
    %v1477 = vadd.f32 0.0, %v1476
    %1478 = vdwg.mxu0
    %1479 = vrot.lane.b32.xlu0 %v1072, 64
    %v1480 = vpop.permute.xlu0 %1479
    %v1483 = vsel %vm213, %v1371, 0
    %1485 = vmatpush.msra.mxu0 0.0
    %1486 = vmatpush.msra.mxu0 0.0
    %1487 = vmatpush.msra.mxu0 0.0
    %1488 = vmatpush.msra.mxu0 0.0
    %1489 = vmatpush.msra.mxu0 0.0
    %1490 = vmatpush.msra.mxu0 0.0
    %1491 = vmatpush.msra.mxu0 0.0
    %1492 = vmatpush.msra.mxu0 0.0
    %1493 = vmatpush.msra.mxu0 0.0
    %1494 = vmatpush.msra.mxu0 0.0
    %1495 = vmatpush.msra.mxu0 0.0
    %1496 = vmatpush.msra.mxu0 0.0
    %1497 = vmatpush.msra.mxu0 0.0
    %1498 = vmatpush.msra.mxu0 0.0
    %1499 = vmatpush.msra.mxu0 0.0
    %1500 = vmatpush.msra.mxu0 %v1480
    %1501 = vmatmul.f32.gmra.mxu0 %v1483
    %v1502 = vpop.f32.mrf.mxu0
    %v1503 = vadd.f32 0.0, %v1502
    %1504 = vdwg.mxu0
    %1505 = vrot.lane.b32.xlu0 %v1074, 64
    %v1506 = vpop.permute.xlu0 %1505
    %v1509 = vsel %vm213, %v1372, 0
    %1511 = vmatpush.msra.mxu0 0.0
    %1512 = vmatpush.msra.mxu0 0.0
    %1513 = vmatpush.msra.mxu0 0.0
    %1514 = vmatpush.msra.mxu0 0.0
    %1515 = vmatpush.msra.mxu0 0.0
    %1516 = vmatpush.msra.mxu0 0.0
    %1517 = vmatpush.msra.mxu0 0.0
    %1518 = vmatpush.msra.mxu0 0.0
    %1519 = vmatpush.msra.mxu0 0.0
    %1520 = vmatpush.msra.mxu0 0.0
    %1521 = vmatpush.msra.mxu0 0.0
    %1522 = vmatpush.msra.mxu0 0.0
    %1523 = vmatpush.msra.mxu0 0.0
    %1524 = vmatpush.msra.mxu0 0.0
    %1525 = vmatpush.msra.mxu0 0.0
    %1526 = vmatpush.msra.mxu0 %v1506
    %1527 = vmatmul.f32.gmra.mxu0 %v1509
    %v1528 = vpop.f32.mrf.mxu0
    %v1529 = vadd.f32 0.0, %v1528
    %1530 = vdwg.mxu0
    %1531 = vrot.lane.b32.xlu0 %v1076, 64
    %v1532 = vpop.permute.xlu0 %1531
    %v1535 = vsel %vm213, %v1373, 0
    %1537 = vmatpush.msra.mxu0 0.0
    %1538 = vmatpush.msra.mxu0 0.0
    %1539 = vmatpush.msra.mxu0 0.0
    %1540 = vmatpush.msra.mxu0 0.0
    %1541 = vmatpush.msra.mxu0 0.0
    %1542 = vmatpush.msra.mxu0 0.0
    %1543 = vmatpush.msra.mxu0 0.0
    %1544 = vmatpush.msra.mxu0 0.0
    %1545 = vmatpush.msra.mxu0 0.0
    %1546 = vmatpush.msra.mxu0 0.0
    %1547 = vmatpush.msra.mxu0 0.0
    %1548 = vmatpush.msra.mxu0 0.0
    %1549 = vmatpush.msra.mxu0 0.0
    %1550 = vmatpush.msra.mxu0 0.0
    %1551 = vmatpush.msra.mxu0 0.0
    %1552 = vmatpush.msra.mxu0 %v1532
    %1553 = vmatmul.f32.gmra.mxu0 %v1535
    %v1554 = vpop.f32.mrf.mxu0
    %v1555 = vadd.f32 0.0, %v1554
    %1556 = vdwg.mxu0
    %1557 = vrot.lane.b32.xlu0 %v1078, 64
    %v1558 = vpop.permute.xlu0 %1557
    %v1561 = vsel %vm213, %v1374, 0
    %1563 = vmatpush.msra.mxu0 0.0
    %1564 = vmatpush.msra.mxu0 0.0
    %1565 = vmatpush.msra.mxu0 0.0
    %1566 = vmatpush.msra.mxu0 0.0
    %1567 = vmatpush.msra.mxu0 0.0
    %1568 = vmatpush.msra.mxu0 0.0
    %1569 = vmatpush.msra.mxu0 0.0
    %1570 = vmatpush.msra.mxu0 0.0
    %1571 = vmatpush.msra.mxu0 0.0
    %1572 = vmatpush.msra.mxu0 0.0
    %1573 = vmatpush.msra.mxu0 0.0
    %1574 = vmatpush.msra.mxu0 0.0
    %1575 = vmatpush.msra.mxu0 0.0
    %1576 = vmatpush.msra.mxu0 0.0
    %1577 = vmatpush.msra.mxu0 0.0
    %1578 = vmatpush.msra.mxu0 %v1558
    %1579 = vmatmul.f32.gmra.mxu0 %v1561
    %v1580 = vpop.f32.mrf.mxu0
    %v1581 = vadd.f32 0.0, %v1580
    %1582 = vdwg.mxu0
    %1585 = vrot.lane.b32.xlu0 %v1451, 8
    %v1586 = vpop.permute.xlu0 %1585
    %1587 = vrot.lane.b32.xlu0 %v1477, 8
    %v1588 = vpop.permute.xlu0 %1587
    %1593 = vrot.lane.b32.xlu0 %v1503, 16
    %v1594 = vpop.permute.xlu0 %1593
    %1595 = vrot.lane.b32.xlu0 %v1529, 16
    %v1596 = vpop.permute.xlu0 %1595
    %1601 = vrot.lane.b32.xlu0 %v1555, 24
    %v1602 = vpop.permute.xlu0 %1601
    %1603 = vrot.lane.b32.xlu0 %v1581, 24
    %v1604 = vpop.permute.xlu0 %1603
    %v1607 = vsel %vm213, %v1399, %v1586
    %v1608 = vsel %vm213, %v1425, %v1588
    %v1609 = vsel %vm742, %v1607, %v1594
    %v1610 = vsel %vm742, %v1608, %v1596
    %v1611 = vsel %vm745, %v1609, %v1602
    %v1612 = vsel %vm745, %v1610, %v1604
    %v1613 = vpack.c.bf16 %v1612, %v1611
    %s1614 = scalar_lea.vmem %s4, 16
    %v1615 = vld [vmem:[%s1614] sm:$0xf]
    %v1616 = vld [vmem:[%s1614 + $0x4] sm:$0xf]
    %v1617 = vld [vmem:[%s1614 + $0x8] sm:$0xf]
    %v1618 = vld [vmem:[%s1614 + $0xc] sm:$0xf]
    %v1619 = vperm.slane %v1024, 0
    %v1624 = vunpack.c.l.b16 %v1615
    %v1625 = vunpack.c.l.b16 %v1616
    %v1626 = vunpack.c.l.b16 %v1617
    %v1627 = vunpack.c.l.b16 %v1618
    %v1628 = vpack.c.b16 %v1625, %v1624
    %v1629 = vpack.c.b16 %v1627, %v1626
    %v1633 = vsel %vm100, %v1613, 0
    %1635 = vmatpush.bf16.msra.mxu0 0
    %1636 = vmatpush.bf16.msra.mxu0 0
    %1637 = vmatpush.bf16.msra.mxu0 0
    %1638 = vmatpush.bf16.msra.mxu0 0
    %1639 = vmatpush.bf16.msra.mxu0 0
    %1640 = vmatpush.bf16.msra.mxu0 0
    %1641 = vmatpush.bf16.msra.mxu0 %v1629
    %1642 = vmatpush.bf16.msra.mxu0 %v1628
    %1643 = vmatmul.bf16.gmra.mxu0 %v1633
    %v1644 = vpop.f32.mrf.mxu0
    %v1645 = vadd.f32 %v1619, %v1644
    %v1646 = vpop.f32.mrf.mxu0
    %v1647 = vadd.f32 %v1619, %v1646
    %1648 = vdwg.mxu0
    %v1649 = vadd.f32 %v1021, %v1645
    %v1650 = vadd.f32 %v1022, %v1647
    %v1651 = vsel %vm100, %v1649, 0.0
    %1652 = vadd.xlane.f32.xlu0 %v1651
    %v1653 = vpop.xlane.xlu0 %1652
    %v1654 = vsel %vm100, %v1650, 0.0
    %1655 = vadd.xlane.f32.xlu0 %v1654
    %v1656 = vpop.xlane.xlu0 %1655
    %v1657 = vmul.f32 %v1653, %v113
    %v1658 = vmul.f32 %v1656, %v113
    %v1659 = vsub.f32 %v1649, %v1657
    %v1660 = vsub.f32 %v1650, %v1658
    %v1661 = vmul.f32 %v1659, %v1659
    %v1662 = vmul.f32 %v1660, %v1660
    %v1663 = vsel %vm100, %v1661, 0.0
    %1664 = vadd.xlane.f32.xlu0 %v1663
    %v1665 = vpop.xlane.xlu0 %1664
    %v1666 = vsel %vm100, %v1662, 0.0
    %1667 = vadd.xlane.f32.xlu0 %v1666
    %v1668 = vpop.xlane.xlu0 %1667
    %v1669 = vmul.f32 %v1665, %v113
    %v1670 = vmul.f32 %v1668, %v113
    %v1671 = vadd.f32 %v1669, 1e-12
    %v1672 = vadd.f32 %v1670, 1e-12
    %v1673 = vrsqrt.pop %v1671
    %v1674 = vmul.f32 %v1673, %v1671
    %v1675 = vmul.f32 %v1674, %v1673
    %v1676 = vmul.f32 0.5, %v1675
    %v1677 = vsub.f32 1.5, %v1676
    %v1678 = vmul.f32 %v1673, %v1677
    %vm1679 = vweird.f32 %v1671
    %vm1680 = vweird.f32 %v1673
    %vm1681 = vmor %vm1679, %vm1680
    %v1682 = vsel %vm1681, %v1673, %v1678
    %v1683 = vrsqrt.pop %v1672
    %v1684 = vmul.f32 %v1683, %v1672
    %v1685 = vmul.f32 %v1684, %v1683
    %v1686 = vmul.f32 0.5, %v1685
    %v1687 = vsub.f32 1.5, %v1686
    %v1688 = vmul.f32 %v1683, %v1687
    %vm1689 = vweird.f32 %v1672
    %vm1690 = vweird.f32 %v1683
    %vm1691 = vmor %vm1689, %vm1690
    %v1692 = vsel %vm1691, %v1683, %v1688
    %v1693 = vmul.f32 %v1659, %v1682
    %v1694 = vmul.f32 %v1660, %v1692
    %v1695 = vperm.slane %v1024, 2
    %v1696 = vmul.f32 %v1693, %v1695
    %v1697 = vmul.f32 %v1694, %v1695
    %v1698 = vperm.slane %v1024, 3
    %v1699 = vadd.f32 %v1696, %v1698
    %v1700 = vadd.f32 %v1697, %v1698
    %v1701 = vpack.c.bf16 %v1700, %v1699
    %s1702 = scalar_lea.vmem %s5, 16
    %v1703 = vld [vmem:[%s1702] sm:$0xf]
    %v1704 = vld [vmem:[%s1702 + $0x4] sm:$0xf]
    %v1705 = vld [vmem:[%s1702 + $0x8] sm:$0xf]
    %v1706 = vld [vmem:[%s1702 + $0xc] sm:$0xf]
    %s1707 = scalar_lea.vmem %s6, 1
    %v1708 = vld [vmem:[%s1707] sm:$0x1]
    %v1710 = vperm.slane %v1708, 0
    %v1716 = vunpack.c.l.b16 %v1703
    %v1717 = vunpack.c.l.b16 %v1704
    %v1718 = vunpack.c.l.b16 %v1705
    %v1719 = vunpack.c.l.b16 %v1706
    %v1720 = vpack.c.b16 %v1717, %v1716
    %v1721 = vpack.c.b16 %v1719, %v1718
    %v1725 = vsel %vm100, %v1701, 0
    %1727 = vmatpush.bf16.msra.mxu0 0
    %1728 = vmatpush.bf16.msra.mxu0 0
    %1729 = vmatpush.bf16.msra.mxu0 0
    %1730 = vmatpush.bf16.msra.mxu0 0
    %1731 = vmatpush.bf16.msra.mxu0 0
    %1732 = vmatpush.bf16.msra.mxu0 0
    %1733 = vmatpush.bf16.msra.mxu0 %v1721
    %1734 = vmatpush.bf16.msra.mxu0 %v1720
    %1735 = vmatmul.bf16.gmra.mxu0 %v1725
    %v1736 = vpop.f32.mrf.mxu0
    %v1737 = vadd.f32 %v1710, %v1736
    %v1738 = vpop.f32.mrf.mxu0
    %v1739 = vadd.f32 %v1710, %v1738
    %1740 = vdwg.mxu0
    %v1741 = vmul.f32 %v1737, %v1737
    %v1742 = vmul.f32 %v1739, %v1739
    %v1743 = vmul.f32 %v1737, %v1741
    %v1744 = vmul.f32 %v1739, %v1742
    %v1745 = vmul.f32 %v1743, 0.044715
    %v1746 = vmul.f32 %v1744, 0.044715
    %v1747 = vadd.f32 %v1737, %v1745
    %v1748 = vadd.f32 %v1739, %v1746
    %v1749 = vmul.f32 %v1747, 0.7978846
    %v1750 = vmul.f32 %v1748, 0.7978846
    %v1751 = vtanh.pop %v1749
    %v1752 = vtanh.pop %v1750
    %v1753 = vadd.f32 %v1751, 1.0
    %v1754 = vadd.f32 %v1752, 1.0
    %v1755 = vmul.f32 %v1753, 0.5
    %v1756 = vmul.f32 %v1754, 0.5
    %v1757 = vmul.f32 %v1737, %v1755
    %v1758 = vmul.f32 %v1739, %v1756
    %v1759 = vpack.c.bf16 %v1758, %v1757
    %s1760 = scalar_lea.vmem %s7, 64
    %v1761 = vld [vmem:[%s1760] sm:$0xf]
    %v1762 = vld [vmem:[%s1760 + $0x4] sm:$0xf]
    %v1763 = vld [vmem:[%s1760 + $0x8] sm:$0xf]
    %v1764 = vld [vmem:[%s1760 + $0xc] sm:$0xf]
    %v1765 = vld [vmem:[%s1760 + $0x10] sm:$0xf]
    %v1766 = vld [vmem:[%s1760 + $0x14] sm:$0xf]
    %v1767 = vld [vmem:[%s1760 + $0x18] sm:$0xf]
    %v1768 = vld [vmem:[%s1760 + $0x1c] sm:$0xf]
    %v1769 = vld [vmem:[%s1760 + $0x20] sm:$0xf]
    %v1770 = vld [vmem:[%s1760 + $0x24] sm:$0xf]
    %v1771 = vld [vmem:[%s1760 + $0x28] sm:$0xf]
    %v1772 = vld [vmem:[%s1760 + $0x2c] sm:$0xf]
    %v1773 = vld [vmem:[%s1760 + $0x30] sm:$0xf]
    %v1774 = vld [vmem:[%s1760 + $0x34] sm:$0xf]
    %v1775 = vld [vmem:[%s1760 + $0x38] sm:$0xf]
    %v1776 = vld [vmem:[%s1760 + $0x3c] sm:$0xf]
    %v1777 = vperm.slane %v1024, 1
    %v1794 = vunpack.c.l.b16 %v1761
    %v1795 = vunpack.c.l.b16 %v1762
    %v1796 = vunpack.c.l.b16 %v1763
    %v1797 = vunpack.c.l.b16 %v1764
    %v1798 = vunpack.c.l.b16 %v1765
    %v1799 = vunpack.c.l.b16 %v1766
    %v1800 = vunpack.c.l.b16 %v1767
    %v1801 = vunpack.c.l.b16 %v1768
    %v1802 = vunpack.c.l.b16 %v1769
    %v1803 = vunpack.c.l.b16 %v1770
    %v1804 = vunpack.c.l.b16 %v1771
    %v1805 = vunpack.c.l.b16 %v1772
    %v1806 = vunpack.c.l.b16 %v1773
    %v1807 = vunpack.c.l.b16 %v1774
    %v1808 = vunpack.c.l.b16 %v1775
    %v1809 = vunpack.c.l.b16 %v1776
    %v1810 = vpack.c.b16 %v1795, %v1794
    %v1811 = vpack.c.b16 %v1797, %v1796
    %v1812 = vpack.c.b16 %v1799, %v1798
    %v1813 = vpack.c.b16 %v1801, %v1800
    %v1814 = vpack.c.b16 %v1803, %v1802
    %v1815 = vpack.c.b16 %v1805, %v1804
    %v1816 = vpack.c.b16 %v1807, %v1806
    %v1817 = vpack.c.b16 %v1809, %v1808
    %1826 = vmatpush.bf16.msra.mxu0 %v1817
    %1827 = vmatpush.bf16.msra.mxu0 %v1816
    %1828 = vmatpush.bf16.msra.mxu0 %v1815
    %1829 = vmatpush.bf16.msra.mxu0 %v1814
    %1830 = vmatpush.bf16.msra.mxu0 %v1813
    %1831 = vmatpush.bf16.msra.mxu0 %v1812
    %1832 = vmatpush.bf16.msra.mxu0 %v1811
    %1833 = vmatpush.bf16.msra.mxu0 %v1810
    %1834 = vmatmul.bf16.gmra.mxu0 %v1759
    %v1835 = vpop.f32.mrf.mxu0
    %v1836 = vadd.f32 %v1777, %v1835
    %v1837 = vpop.f32.mrf.mxu0
    %v1838 = vadd.f32 %v1777, %v1837
    %1839 = vdwg.mxu0
    %v1840 = vadd.f32 %v1699, %v1836
    %v1841 = vadd.f32 %v1700, %v1838
    %v1842 = vsel %vm100, %v1840, 0.0
    %1843 = vadd.xlane.f32.xlu0 %v1842
    %v1844 = vpop.xlane.xlu0 %1843
    %v1845 = vsel %vm100, %v1841, 0.0
    %1846 = vadd.xlane.f32.xlu0 %v1845
    %v1847 = vpop.xlane.xlu0 %1846
    %v1848 = vmul.f32 %v1844, %v113
    %v1849 = vmul.f32 %v1847, %v113
    %v1850 = vsub.f32 %v1840, %v1848
    %v1851 = vsub.f32 %v1841, %v1849
    %v1852 = vmul.f32 %v1850, %v1850
    %v1853 = vmul.f32 %v1851, %v1851
    %v1854 = vsel %vm100, %v1852, 0.0
    %1855 = vadd.xlane.f32.xlu0 %v1854
    %v1856 = vpop.xlane.xlu0 %1855
    %v1857 = vsel %vm100, %v1853, 0.0
    %1858 = vadd.xlane.f32.xlu0 %v1857
    %v1859 = vpop.xlane.xlu0 %1858
    %v1860 = vmul.f32 %v1856, %v113
    %v1861 = vmul.f32 %v1859, %v113
    %v1862 = vadd.f32 %v1860, 1e-12
    %v1863 = vadd.f32 %v1861, 1e-12
    %v1864 = vrsqrt.pop %v1862
    %v1865 = vmul.f32 %v1864, %v1862
    %v1866 = vmul.f32 %v1865, %v1864
    %v1867 = vmul.f32 0.5, %v1866
    %v1868 = vsub.f32 1.5, %v1867
    %v1869 = vmul.f32 %v1864, %v1868
    %vm1870 = vweird.f32 %v1862
    %vm1871 = vweird.f32 %v1864
    %vm1872 = vmor %vm1870, %vm1871
    %v1873 = vsel %vm1872, %v1864, %v1869
    %v1874 = vrsqrt.pop %v1863
    %v1875 = vmul.f32 %v1874, %v1863
    %v1876 = vmul.f32 %v1875, %v1874
    %v1877 = vmul.f32 0.5, %v1876
    %v1878 = vsub.f32 1.5, %v1877
    %v1879 = vmul.f32 %v1874, %v1878
    %vm1880 = vweird.f32 %v1863
    %vm1881 = vweird.f32 %v1874
    %vm1882 = vmor %vm1880, %vm1881
    %v1883 = vsel %vm1882, %v1874, %v1879
    %v1884 = vmul.f32 %v1850, %v1873
    %v1885 = vmul.f32 %v1851, %v1883
    %v1886 = vperm.slane %v1024, 4
    %v1887 = vmul.f32 %v1884, %v1886
    %v1888 = vmul.f32 %v1885, %v1886
    %v1889 = vperm.slane %v1024, 5
    %v1890 = vadd.f32 %v1887, %v1889
    %v1891 = vadd.f32 %v1888, %v1889
    %v1892 = vpack.c.bf16 %v1890, %v1890
    %v1893 = vpack.c.bf16 %v1891, %v1891
    %v1894 = vld [vmem:[%s9] sm:$0xf]
    %v1895 = vld [vmem:[%s9 + $0x4] sm:$0xf]
    %v1896 = vld [vmem:[%s9 + $0x8] sm:$0xf]
    %v1897 = vld [vmem:[%s9 + $0xc] sm:$0xf]
    %v1898 = vperm.slane %v57, 0
    %v1901 = vunpack.c.l.b16 %v1892
    %v1902 = vunpack.c.l.b16 %v1893
    %v1903 = vrot.slane %v1902, 7
    %vm1904 = vcmask 1041409
    %v1905 = vsel %vm1904, %v1903, %v1901
    %v1906 = vpack.c.b16 %v1905, %v1905
    %v1911 = vunpack.c.l.b16 %v1894
    %v1912 = vunpack.c.l.b16 %v1895
    %v1913 = vunpack.c.l.b16 %v1896
    %v1914 = vunpack.c.l.b16 %v1897
    %v1915 = vpack.c.b16 %v1912, %v1911
    %v1916 = vpack.c.b16 %v1914, %v1913
    %v1920 = vsel %vm100, %v1906, 0
    %1922 = vmatpush.bf16.msra.mxu0 0
    %1923 = vmatpush.bf16.msra.mxu0 0
    %1924 = vmatpush.bf16.msra.mxu0 0
    %1925 = vmatpush.bf16.msra.mxu0 0
    %1926 = vmatpush.bf16.msra.mxu0 0
    %1927 = vmatpush.bf16.msra.mxu0 0
    %1928 = vmatpush.bf16.msra.mxu0 %v1916
    %1929 = vmatpush.bf16.msra.mxu0 %v1915
    %1930 = vmatmul.bf16.gmra.mxu0 %v1920
    %v1931 = vpop.f32.mrf.mxu0
    %v1932 = vadd.f32 %v1898, %v1931
    %v1933 = vpop.f32.mrf.mxu0
    %1934 = vdwg.mxu0
    %v1935 = vtanh.pop %v1932
    %vm1936 = vcmask 254976
    %1937 = vst.msk [vmem:[#allocation2] sm:$0x3] %vm1936, %v1935
    // Predicated region
    $region42: #{zero_tc_forward.1} parent=1 // pred_check
      _
    $region43: #{zero_tc_forward.1} parent=1 // pred_check_branch
      %1939 = sbr.rel (0) target = $region45
    $region44: #{zero_tc_forward.1} parent=1 // pred_region
      %1941 = vsyncadd [#allocation3], 0
      %s1943 = sshll.u32 [#allocation2], 4
      %s1944 = int_to_ptr.vmem [resolvable:$true] %s1943
      %s1945 = sshll.u32 %s10, 4
      %s1946 = int_to_ptr.hbm [resolvable:$true] %s1945
      %1948 = dma.vmem_to_hbm [thread:$0]  %s1944, 32, %s1946, [#allocation3]
    $region45: #{zero_tc_forward.1} parent=1 // pred_fallthru
      _
    // Predicated region
    $region46: #{zero_tc_forward.1} parent=1 // pred_check
      _
    $region47: #{zero_tc_forward.1} parent=1 // pred_check_branch
      %1950 = sbr.rel (0) target = $region49
    $region48: #{zero_tc_forward.1} parent=1 // pred_region
      %1952 = dma.done [#allocation3], 32
    $region49: #{zero_tc_forward.1} parent=1 // pred_fallthru
      _
    %1953 = vsyncpa [#allocation3], 1

</llo_original>
